<compile_context>
chip_gen: v7x
topology: tpu7x:2x2x1
jax: 0.10.0
libtpu: 0.0.40
codegen_flags: <defaults>
</compile_context>

<pallas_src>
import functools

import jax
import jax.numpy as jnp
from jax import lax
from jax.experimental import pallas as pl
from jax.experimental.pallas import tpu as pltpu


def decoder_embeddings_kernel(ids_ref,    # SMEM (B*S,) int32   (scalar prefetch)
                              wemb_hbm,   # HBM  (V, H) f32     (memory_space=ANY)
                              pemb_ref,   # VMEM (S, H) f32     (only the S used rows)
                              gamma_ref,  # VMEM (1, H) f32
                              beta_ref,   # VMEM (1, H) f32
                              out_ref,    # VMEM (B, S, H) f32
                              gbuf,       # VMEM (B, S, H) f32  scratch (gathered rows)
                              sem,        # DMA semaphores (B, S)
                              *, eps, vocab_size):
    batch, seq, hidden = out_ref.shape

    # --- Row-gather DMA: fetch only the B*S used rows of the word-embedding table
    #     (B*S*H*4 = 16 KiB) straight from HBM.  Issue every copy first, then wait,
    #     so the small row fetches overlap each other.
    for b in range(batch):                       # static trip counts (B*S = 16)
        for s in range(seq):
            tok = ids_ref[b * seq + s]
            # Clamp to a valid row: an OOB id would otherwise trip the DMA bounds check.
            tok = jnp.clip(tok, 0, vocab_size - 1)
            pltpu.make_async_copy(wemb_hbm.at[tok], gbuf.at[b, s], sem.at[b, s]).start()
    for b in range(batch):
        for s in range(seq):
            pltpu.make_async_copy(wemb_hbm.at[0], gbuf.at[b, s], sem.at[b, s]).wait()

    # Positional embeddings broadcast over the batch dim; no concat / extra slab.
    x = gbuf[...] + pemb_ref[...][None, :, :]                   # (B, S, H)

    # --- LayerNorm over H (biased variance, matching torch.nn.LayerNorm). ---
    mean = jnp.mean(x, axis=-1, keepdims=True)
    centered = x - mean
    var = jnp.mean(centered * centered, axis=-1, keepdims=True)
    normed = centered * lax.rsqrt(var + eps)
    y = normed * gamma_ref[...] + beta_ref[...]                 # (1,H) broadcasts

    # Dropout: identity in eval mode.
    out_ref[...] = y.astype(out_ref.dtype)                      # single lane-dense store


def decoder_embeddings(ids, word_emb, pos_emb, gamma, beta, *, eps=1e-12):
    """ids: (B, S) int; word_emb: (V, H); pos_emb: (P, H); gamma/beta: (H,)."""
    B, S = ids.shape
    V, H = word_emb.shape
    BS = B * S

    ids_flat = ids.reshape(BS).astype(jnp.int32)         # 1-D SMEM operand (no 2-D pad)
    pos_used = pos_emb[:S]                                # only the S rows actually used
    gamma2 = jnp.asarray(gamma, jnp.float32).reshape(1, H)
    beta2 = jnp.asarray(beta, jnp.float32).reshape(1, H)

    kernel = functools.partial(decoder_embeddings_kernel, eps=eps, vocab_size=V)

    grid_spec = pltpu.PrefetchScalarGridSpec(
        num_scalar_prefetch=1,                            # ids -> SMEM before the grid
        grid=(1,),                                        # whole problem in one step
        in_specs=[
            pl.BlockSpec(memory_space=pl.ANY),            # word-emb table stays in HBM
            pl.BlockSpec((S, H), lambda i, ids: (0, 0)),  # S positional rows
            pl.BlockSpec((1, H), lambda i, ids: (0, 0)),  # gamma
            pl.BlockSpec((1, H), lambda i, ids: (0, 0)),  # beta
        ],
        out_specs=pl.BlockSpec((B, S, H), lambda i, ids: (0, 0, 0)),
        scratch_shapes=[
            pltpu.VMEM((B, S, H), jnp.float32),           # gathered embedding rows
            pltpu.SemaphoreType.DMA((B, S)),              # one sem per row gather
        ],
    )

    out = pl.pallas_call(
        kernel,
        out_shape=jax.ShapeDtypeStruct((B, S, H), jnp.float32),
        grid_spec=grid_spec,
        compiler_params=pltpu.CompilerParams(
            dimension_semantics=("arbitrary",)),
    )(ids_flat, word_emb, pos_used, gamma2, beta2)

    return out


def reference(ids, word_emb, pos_emb, gamma, beta, eps=1e-12):
    B, S = ids.shape
    ie = word_emb[ids]                            # (B, S, H)
    pe = pos_emb[jnp.arange(S)][None, :, :]       # (1, S, H)
    x = ie + pe
    mean = jnp.mean(x, axis=-1, keepdims=True)
    var = jnp.mean((x - mean) ** 2, axis=-1, keepdims=True)
    return (x - mean) / jnp.sqrt(var + eps) * gamma + beta


if __name__ == "__main__":
    # Module hyperparameters (small sequence/batch, module-sized tables).
    vocab_size = 717
    hidden_dim = 256
    pad_token_id = 277
    max_position_embeddings = 128
    layer_norm_eps = 1e-12

    B, S = 2, 8

    key = jax.random.PRNGKey(0)
    k_w, k_p, k_ids = jax.random.split(key, 3)

    # nn.Embedding default init: N(0, 1); padding_idx row zeroed.
    word_emb = jax.random.normal(k_w, (vocab_size, hidden_dim), dtype=jnp.float32)
    word_emb = word_emb.at[pad_token_id].set(0.0)
    pos_emb = jax.random.normal(k_p, (max_position_embeddings, hidden_dim),
                                dtype=jnp.float32)
    # LayerNorm default init.
    gamma = jnp.ones((hidden_dim,), dtype=jnp.float32)
    beta = jnp.zeros((hidden_dim,), dtype=jnp.float32)

    # Token ids; include the pad token to exercise the zeroed row.
    ids = jax.random.randint(k_ids, (B, S), 0, vocab_size, dtype=jnp.int32)
    ids = ids.at[0, -1].set(pad_token_id)

    out = decoder_embeddings(ids, word_emb, pos_emb, gamma, beta,
                             eps=layer_norm_eps)
    out = jax.block_until_ready(out)

    ref = reference(ids, word_emb, pos_emb, gamma, beta, eps=layer_norm_eps)
    assert out.shape == (B, S, hidden_dim)
    assert jnp.allclose(out, ref, atol=1e-4, rtol=1e-4), "mismatch vs reference"

    print("KERNEL_OK")
</pallas_src>

<mosaic_0001>
module attributes {stable_mosaic.version = 11 : i64} {
  func.func @decoder_embeddings_kernel(%arg0: i32, %arg1: memref<16xi32, #tpu.memory_space<smem>>, %arg2: memref<717x256xf32, #tpu.memory_space<any>>, %arg3: memref<8x256xf32, #tpu.memory_space<vmem>>, %arg4: memref<1x256xf32, #tpu.memory_space<vmem>>, %arg5: memref<1x256xf32, #tpu.memory_space<vmem>>, %arg6: memref<2x8x256xf32, #tpu.memory_space<vmem>>, %arg7: memref<2x8x256xf32, #tpu.memory_space<vmem>>, %arg8: memref<2x8x!tpu.dma_semaphore, #tpu.memory_space<semaphore_mem>>) attributes {dimension_semantics = [#tpu.dimension_semantics<arbitrary>], iteration_bounds = array<i64: 1>, scalar_prefetch = 1 : i64, scratch_operands = 2 : i64, tpu.core_type = #tpu.core_type<tc>, window_params = [{}, {pipeline_mode = #tpu.pipeline_mode<synchronous>, transform_indices = @transform_1, window_bounds = array<i64: 8, 256>}, {pipeline_mode = #tpu.pipeline_mode<synchronous>, transform_indices = @transform_2, window_bounds = array<i64: 1, 256>}, {pipeline_mode = #tpu.pipeline_mode<synchronous>, transform_indices = @transform_3, window_bounds = array<i64: 1, 256>}, {pipeline_mode = #tpu.pipeline_mode<synchronous>, transform_indices = @transform_4, window_bounds = array<i64: 2, 8, 256>}]} {
    %c0 = arith.constant 0 : index
    %0 = memref.load %arg1[%c0] : memref<16xi32, #tpu.memory_space<smem>>
    %c0_i32 = arith.constant 0 : i32
    %c716_i32 = arith.constant 716 : i32
    %1 = arith.maxsi %c0_i32, %0 : i32
    %2 = arith.minsi %c716_i32, %1 : i32
    %c0_i32_0 = arith.constant 0 : i32
    %c0_i32_1 = arith.constant 0 : i32
    %c0_i32_2 = arith.constant 0 : i32
    %c0_i32_3 = arith.constant 0 : i32
    %c0_i32_4 = arith.constant 0 : i32
    %3 = tpu.memref_slice %arg2[%2, %c0_i32_4] : memref<717x256xf32, #tpu.memory_space<any>> -> memref<1x256xf32, #tpu.memory_space<any>>
    %4 = tpu.memref_squeeze %3 : memref<1x256xf32, #tpu.memory_space<any>> -> memref<256xf32, #tpu.memory_space<any>>
    %c0_i32_5 = arith.constant 0 : i32
    %5 = tpu.memref_slice %arg7[%c0_i32_0, %c0_i32_1, %c0_i32_5] : memref<2x8x256xf32, #tpu.memory_space<vmem>> -> memref<1x1x256xf32, #tpu.memory_space<vmem>>
    %6 = tpu.memref_squeeze %5 : memref<1x1x256xf32, #tpu.memory_space<vmem>> -> memref<256xf32, #tpu.memory_space<vmem>>
    %7 = tpu.memref_slice %arg8[%c0_i32_2, %c0_i32_3] : memref<2x8x!tpu.dma_semaphore, #tpu.memory_space<semaphore_mem>> -> memref<1x1x!tpu.dma_semaphore, #tpu.memory_space<semaphore_mem>>
    %8 = tpu.memref_squeeze %7 : memref<1x1x!tpu.dma_semaphore, #tpu.memory_space<semaphore_mem>> -> memref<!tpu.dma_semaphore, #tpu.memory_space<semaphore_mem>>
    tpu.enqueue_dma source(%4 : memref<256xf32, #tpu.memory_space<any>>) target(%6 : memref<256xf32, #tpu.memory_space<vmem>>) target_semaphore(%8 : memref<!tpu.dma_semaphore, #tpu.memory_space<semaphore_mem>>)
    %c1 = arith.constant 1 : index
    %9 = memref.load %arg1[%c1] : memref<16xi32, #tpu.memory_space<smem>>
    %c0_i32_6 = arith.constant 0 : i32
    %c716_i32_7 = arith.constant 716 : i32
    %10 = arith.maxsi %c0_i32_6, %9 : i32
    %11 = arith.minsi %c716_i32_7, %10 : i32
    %c0_i32_8 = arith.constant 0 : i32
    %c1_i32 = arith.constant 1 : i32
    %c0_i32_9 = arith.constant 0 : i32
    %c1_i32_10 = arith.constant 1 : i32
    %c0_i32_11 = arith.constant 0 : i32
    %12 = tpu.memref_slice %arg2[%11, %c0_i32_11] : memref<717x256xf32, #tpu.memory_space<any>> -> memref<1x256xf32, #tpu.memory_space<any>>
    %13 = tpu.memref_squeeze %12 : memref<1x256xf32, #tpu.memory_space<any>> -> memref<256xf32, #tpu.memory_space<any>>
    %c0_i32_12 = arith.constant 0 : i32
    %14 = tpu.memref_slice %arg7[%c0_i32_8, %c1_i32, %c0_i32_12] : memref<2x8x256xf32, #tpu.memory_space<vmem>> -> memref<1x1x256xf32, #tpu.memory_space<vmem>>
    %15 = tpu.memref_squeeze %14 : memref<1x1x256xf32, #tpu.memory_space<vmem>> -> memref<256xf32, #tpu.memory_space<vmem>>
    %16 = tpu.memref_slice %arg8[%c0_i32_9, %c1_i32_10] : memref<2x8x!tpu.dma_semaphore, #tpu.memory_space<semaphore_mem>> -> memref<1x1x!tpu.dma_semaphore, #tpu.memory_space<semaphore_mem>>
    %17 = tpu.memref_squeeze %16 : memref<1x1x!tpu.dma_semaphore, #tpu.memory_space<semaphore_mem>> -> memref<!tpu.dma_semaphore, #tpu.memory_space<semaphore_mem>>
    tpu.enqueue_dma source(%13 : memref<256xf32, #tpu.memory_space<any>>) target(%15 : memref<256xf32, #tpu.memory_space<vmem>>) target_semaphore(%17 : memref<!tpu.dma_semaphore, #tpu.memory_space<semaphore_mem>>)
    %c2 = arith.constant 2 : index
    %18 = memref.load %arg1[%c2] : memref<16xi32, #tpu.memory_space<smem>>
    %c0_i32_13 = arith.constant 0 : i32
    %c716_i32_14 = arith.constant 716 : i32
    %19 = arith.maxsi %c0_i32_13, %18 : i32
    %20 = arith.minsi %c716_i32_14, %19 : i32
    %c0_i32_15 = arith.constant 0 : i32
    %c2_i32 = arith.constant 2 : i32
    %c0_i32_16 = arith.constant 0 : i32
    %c2_i32_17 = arith.constant 2 : i32
    %c0_i32_18 = arith.constant 0 : i32
    %21 = tpu.memref_slice %arg2[%20, %c0_i32_18] : memref<717x256xf32, #tpu.memory_space<any>> -> memref<1x256xf32, #tpu.memory_space<any>>
    %22 = tpu.memref_squeeze %21 : memref<1x256xf32, #tpu.memory_space<any>> -> memref<256xf32, #tpu.memory_space<any>>
    %c0_i32_19 = arith.constant 0 : i32
    %23 = tpu.memref_slice %arg7[%c0_i32_15, %c2_i32, %c0_i32_19] : memref<2x8x256xf32, #tpu.memory_space<vmem>> -> memref<1x1x256xf32, #tpu.memory_space<vmem>>
    %24 = tpu.memref_squeeze %23 : memref<1x1x256xf32, #tpu.memory_space<vmem>> -> memref<256xf32, #tpu.memory_space<vmem>>
    %25 = tpu.memref_slice %arg8[%c0_i32_16, %c2_i32_17] : memref<2x8x!tpu.dma_semaphore, #tpu.memory_space<semaphore_mem>> -> memref<1x1x!tpu.dma_semaphore, #tpu.memory_space<semaphore_mem>>
    %26 = tpu.memref_squeeze %25 : memref<1x1x!tpu.dma_semaphore, #tpu.memory_space<semaphore_mem>> -> memref<!tpu.dma_semaphore, #tpu.memory_space<semaphore_mem>>
    tpu.enqueue_dma source(%22 : memref<256xf32, #tpu.memory_space<any>>) target(%24 : memref<256xf32, #tpu.memory_space<vmem>>) target_semaphore(%26 : memref<!tpu.dma_semaphore, #tpu.memory_space<semaphore_mem>>)
    %c3 = arith.constant 3 : index
    %27 = memref.load %arg1[%c3] : memref<16xi32, #tpu.memory_space<smem>>
    %c0_i32_20 = arith.constant 0 : i32
    %c716_i32_21 = arith.constant 716 : i32
    %28 = arith.maxsi %c0_i32_20, %27 : i32
    %29 = arith.minsi %c716_i32_21, %28 : i32
    %c0_i32_22 = arith.constant 0 : i32
    %c3_i32 = arith.constant 3 : i32
    %c0_i32_23 = arith.constant 0 : i32
    %c3_i32_24 = arith.constant 3 : i32
    %c0_i32_25 = arith.constant 0 : i32
    %30 = tpu.memref_slice %arg2[%29, %c0_i32_25] : memref<717x256xf32, #tpu.memory_space<any>> -> memref<1x256xf32, #tpu.memory_space<any>>
    %31 = tpu.memref_squeeze %30 : memref<1x256xf32, #tpu.memory_space<any>> -> memref<256xf32, #tpu.memory_space<any>>
    %c0_i32_26 = arith.constant 0 : i32
    %32 = tpu.memref_slice %arg7[%c0_i32_22, %c3_i32, %c0_i32_26] : memref<2x8x256xf32, #tpu.memory_space<vmem>> -> memref<1x1x256xf32, #tpu.memory_space<vmem>>
    %33 = tpu.memref_squeeze %32 : memref<1x1x256xf32, #tpu.memory_space<vmem>> -> memref<256xf32, #tpu.memory_space<vmem>>
    %34 = tpu.memref_slice %arg8[%c0_i32_23, %c3_i32_24] : memref<2x8x!tpu.dma_semaphore, #tpu.memory_space<semaphore_mem>> -> memref<1x1x!tpu.dma_semaphore, #tpu.memory_space<semaphore_mem>>
    %35 = tpu.memref_squeeze %34 : memref<1x1x!tpu.dma_semaphore, #tpu.memory_space<semaphore_mem>> -> memref<!tpu.dma_semaphore, #tpu.memory_space<semaphore_mem>>
    tpu.enqueue_dma source(%31 : memref<256xf32, #tpu.memory_space<any>>) target(%33 : memref<256xf32, #tpu.memory_space<vmem>>) target_semaphore(%35 : memref<!tpu.dma_semaphore, #tpu.memory_space<semaphore_mem>>)
    %c4 = arith.constant 4 : index
    %36 = memref.load %arg1[%c4] : memref<16xi32, #tpu.memory_space<smem>>
    %c0_i32_27 = arith.constant 0 : i32
    %c716_i32_28 = arith.constant 716 : i32
    %37 = arith.maxsi %c0_i32_27, %36 : i32
    %38 = arith.minsi %c716_i32_28, %37 : i32
    %c0_i32_29 = arith.constant 0 : i32
    %c4_i32 = arith.constant 4 : i32
    %c0_i32_30 = arith.constant 0 : i32
    %c4_i32_31 = arith.constant 4 : i32
    %c0_i32_32 = arith.constant 0 : i32
    %39 = tpu.memref_slice %arg2[%38, %c0_i32_32] : memref<717x256xf32, #tpu.memory_space<any>> -> memref<1x256xf32, #tpu.memory_space<any>>
    %40 = tpu.memref_squeeze %39 : memref<1x256xf32, #tpu.memory_space<any>> -> memref<256xf32, #tpu.memory_space<any>>
    %c0_i32_33 = arith.constant 0 : i32
    %41 = tpu.memref_slice %arg7[%c0_i32_29, %c4_i32, %c0_i32_33] : memref<2x8x256xf32, #tpu.memory_space<vmem>> -> memref<1x1x256xf32, #tpu.memory_space<vmem>>
    %42 = tpu.memref_squeeze %41 : memref<1x1x256xf32, #tpu.memory_space<vmem>> -> memref<256xf32, #tpu.memory_space<vmem>>
    %43 = tpu.memref_slice %arg8[%c0_i32_30, %c4_i32_31] : memref<2x8x!tpu.dma_semaphore, #tpu.memory_space<semaphore_mem>> -> memref<1x1x!tpu.dma_semaphore, #tpu.memory_space<semaphore_mem>>
    %44 = tpu.memref_squeeze %43 : memref<1x1x!tpu.dma_semaphore, #tpu.memory_space<semaphore_mem>> -> memref<!tpu.dma_semaphore, #tpu.memory_space<semaphore_mem>>
    tpu.enqueue_dma source(%40 : memref<256xf32, #tpu.memory_space<any>>) target(%42 : memref<256xf32, #tpu.memory_space<vmem>>) target_semaphore(%44 : memref<!tpu.dma_semaphore, #tpu.memory_space<semaphore_mem>>)
    %c5 = arith.constant 5 : index
    %45 = memref.load %arg1[%c5] : memref<16xi32, #tpu.memory_space<smem>>
    %c0_i32_34 = arith.constant 0 : i32
    %c716_i32_35 = arith.constant 716 : i32
    %46 = arith.maxsi %c0_i32_34, %45 : i32
    %47 = arith.minsi %c716_i32_35, %46 : i32
    %c0_i32_36 = arith.constant 0 : i32
    %c5_i32 = arith.constant 5 : i32
    %c0_i32_37 = arith.constant 0 : i32
    %c5_i32_38 = arith.constant 5 : i32
    %c0_i32_39 = arith.constant 0 : i32
    %48 = tpu.memref_slice %arg2[%47, %c0_i32_39] : memref<717x256xf32, #tpu.memory_space<any>> -> memref<1x256xf32, #tpu.memory_space<any>>
    %49 = tpu.memref_squeeze %48 : memref<1x256xf32, #tpu.memory_space<any>> -> memref<256xf32, #tpu.memory_space<any>>
    %c0_i32_40 = arith.constant 0 : i32
    %50 = tpu.memref_slice %arg7[%c0_i32_36, %c5_i32, %c0_i32_40] : memref<2x8x256xf32, #tpu.memory_space<vmem>> -> memref<1x1x256xf32, #tpu.memory_space<vmem>>
    %51 = tpu.memref_squeeze %50 : memref<1x1x256xf32, #tpu.memory_space<vmem>> -> memref<256xf32, #tpu.memory_space<vmem>>
    %52 = tpu.memref_slice %arg8[%c0_i32_37, %c5_i32_38] : memref<2x8x!tpu.dma_semaphore, #tpu.memory_space<semaphore_mem>> -> memref<1x1x!tpu.dma_semaphore, #tpu.memory_space<semaphore_mem>>
    %53 = tpu.memref_squeeze %52 : memref<1x1x!tpu.dma_semaphore, #tpu.memory_space<semaphore_mem>> -> memref<!tpu.dma_semaphore, #tpu.memory_space<semaphore_mem>>
    tpu.enqueue_dma source(%49 : memref<256xf32, #tpu.memory_space<any>>) target(%51 : memref<256xf32, #tpu.memory_space<vmem>>) target_semaphore(%53 : memref<!tpu.dma_semaphore, #tpu.memory_space<semaphore_mem>>)
    %c6 = arith.constant 6 : index
    %54 = memref.load %arg1[%c6] : memref<16xi32, #tpu.memory_space<smem>>
    %c0_i32_41 = arith.constant 0 : i32
    %c716_i32_42 = arith.constant 716 : i32
    %55 = arith.maxsi %c0_i32_41, %54 : i32
    %56 = arith.minsi %c716_i32_42, %55 : i32
    %c0_i32_43 = arith.constant 0 : i32
    %c6_i32 = arith.constant 6 : i32
    %c0_i32_44 = arith.constant 0 : i32
    %c6_i32_45 = arith.constant 6 : i32
    %c0_i32_46 = arith.constant 0 : i32
    %57 = tpu.memref_slice %arg2[%56, %c0_i32_46] : memref<717x256xf32, #tpu.memory_space<any>> -> memref<1x256xf32, #tpu.memory_space<any>>
    %58 = tpu.memref_squeeze %57 : memref<1x256xf32, #tpu.memory_space<any>> -> memref<256xf32, #tpu.memory_space<any>>
    %c0_i32_47 = arith.constant 0 : i32
    %59 = tpu.memref_slice %arg7[%c0_i32_43, %c6_i32, %c0_i32_47] : memref<2x8x256xf32, #tpu.memory_space<vmem>> -> memref<1x1x256xf32, #tpu.memory_space<vmem>>
    %60 = tpu.memref_squeeze %59 : memref<1x1x256xf32, #tpu.memory_space<vmem>> -> memref<256xf32, #tpu.memory_space<vmem>>
    %61 = tpu.memref_slice %arg8[%c0_i32_44, %c6_i32_45] : memref<2x8x!tpu.dma_semaphore, #tpu.memory_space<semaphore_mem>> -> memref<1x1x!tpu.dma_semaphore, #tpu.memory_space<semaphore_mem>>
    %62 = tpu.memref_squeeze %61 : memref<1x1x!tpu.dma_semaphore, #tpu.memory_space<semaphore_mem>> -> memref<!tpu.dma_semaphore, #tpu.memory_space<semaphore_mem>>
    tpu.enqueue_dma source(%58 : memref<256xf32, #tpu.memory_space<any>>) target(%60 : memref<256xf32, #tpu.memory_space<vmem>>) target_semaphore(%62 : memref<!tpu.dma_semaphore, #tpu.memory_space<semaphore_mem>>)
    %c7 = arith.constant 7 : index
    %63 = memref.load %arg1[%c7] : memref<16xi32, #tpu.memory_space<smem>>
    %c0_i32_48 = arith.constant 0 : i32
    %c716_i32_49 = arith.constant 716 : i32
    %64 = arith.maxsi %c0_i32_48, %63 : i32
    %65 = arith.minsi %c716_i32_49, %64 : i32
    %c0_i32_50 = arith.constant 0 : i32
    %c7_i32 = arith.constant 7 : i32
    %c0_i32_51 = arith.constant 0 : i32
    %c7_i32_52 = arith.constant 7 : i32
    %c0_i32_53 = arith.constant 0 : i32
    %66 = tpu.memref_slice %arg2[%65, %c0_i32_53] : memref<717x256xf32, #tpu.memory_space<any>> -> memref<1x256xf32, #tpu.memory_space<any>>
    %67 = tpu.memref_squeeze %66 : memref<1x256xf32, #tpu.memory_space<any>> -> memref<256xf32, #tpu.memory_space<any>>
    %c0_i32_54 = arith.constant 0 : i32
    %68 = tpu.memref_slice %arg7[%c0_i32_50, %c7_i32, %c0_i32_54] : memref<2x8x256xf32, #tpu.memory_space<vmem>> -> memref<1x1x256xf32, #tpu.memory_space<vmem>>
    %69 = tpu.memref_squeeze %68 : memref<1x1x256xf32, #tpu.memory_space<vmem>> -> memref<256xf32, #tpu.memory_space<vmem>>
    %70 = tpu.memref_slice %arg8[%c0_i32_51, %c7_i32_52] : memref<2x8x!tpu.dma_semaphore, #tpu.memory_space<semaphore_mem>> -> memref<1x1x!tpu.dma_semaphore, #tpu.memory_space<semaphore_mem>>
    %71 = tpu.memref_squeeze %70 : memref<1x1x!tpu.dma_semaphore, #tpu.memory_space<semaphore_mem>> -> memref<!tpu.dma_semaphore, #tpu.memory_space<semaphore_mem>>
    tpu.enqueue_dma source(%67 : memref<256xf32, #tpu.memory_space<any>>) target(%69 : memref<256xf32, #tpu.memory_space<vmem>>) target_semaphore(%71 : memref<!tpu.dma_semaphore, #tpu.memory_space<semaphore_mem>>)
    %c8 = arith.constant 8 : index
    %72 = memref.load %arg1[%c8] : memref<16xi32, #tpu.memory_space<smem>>
    %c0_i32_55 = arith.constant 0 : i32
    %c716_i32_56 = arith.constant 716 : i32
    %73 = arith.maxsi %c0_i32_55, %72 : i32
    %74 = arith.minsi %c716_i32_56, %73 : i32
    %c1_i32_57 = arith.constant 1 : i32
    %c0_i32_58 = arith.constant 0 : i32
    %c1_i32_59 = arith.constant 1 : i32
    %c0_i32_60 = arith.constant 0 : i32
    %c0_i32_61 = arith.constant 0 : i32
    %75 = tpu.memref_slice %arg2[%74, %c0_i32_61] : memref<717x256xf32, #tpu.memory_space<any>> -> memref<1x256xf32, #tpu.memory_space<any>>
    %76 = tpu.memref_squeeze %75 : memref<1x256xf32, #tpu.memory_space<any>> -> memref<256xf32, #tpu.memory_space<any>>
    %c0_i32_62 = arith.constant 0 : i32
    %77 = tpu.memref_slice %arg7[%c1_i32_57, %c0_i32_58, %c0_i32_62] : memref<2x8x256xf32, #tpu.memory_space<vmem>> -> memref<1x1x256xf32, #tpu.memory_space<vmem>>
    %78 = tpu.memref_squeeze %77 : memref<1x1x256xf32, #tpu.memory_space<vmem>> -> memref<256xf32, #tpu.memory_space<vmem>>
    %79 = tpu.memref_slice %arg8[%c1_i32_59, %c0_i32_60] : memref<2x8x!tpu.dma_semaphore, #tpu.memory_space<semaphore_mem>> -> memref<1x1x!tpu.dma_semaphore, #tpu.memory_space<semaphore_mem>>
    %80 = tpu.memref_squeeze %79 : memref<1x1x!tpu.dma_semaphore, #tpu.memory_space<semaphore_mem>> -> memref<!tpu.dma_semaphore, #tpu.memory_space<semaphore_mem>>
    tpu.enqueue_dma source(%76 : memref<256xf32, #tpu.memory_space<any>>) target(%78 : memref<256xf32, #tpu.memory_space<vmem>>) target_semaphore(%80 : memref<!tpu.dma_semaphore, #tpu.memory_space<semaphore_mem>>)
    %c9 = arith.constant 9 : index
    %81 = memref.load %arg1[%c9] : memref<16xi32, #tpu.memory_space<smem>>
    %c0_i32_63 = arith.constant 0 : i32
    %c716_i32_64 = arith.constant 716 : i32
    %82 = arith.maxsi %c0_i32_63, %81 : i32
    %83 = arith.minsi %c716_i32_64, %82 : i32
    %c1_i32_65 = arith.constant 1 : i32
    %c1_i32_66 = arith.constant 1 : i32
    %c1_i32_67 = arith.constant 1 : i32
    %c1_i32_68 = arith.constant 1 : i32
    %c0_i32_69 = arith.constant 0 : i32
    %84 = tpu.memref_slice %arg2[%83, %c0_i32_69] : memref<717x256xf32, #tpu.memory_space<any>> -> memref<1x256xf32, #tpu.memory_space<any>>
    %85 = tpu.memref_squeeze %84 : memref<1x256xf32, #tpu.memory_space<any>> -> memref<256xf32, #tpu.memory_space<any>>
    %c0_i32_70 = arith.constant 0 : i32
    %86 = tpu.memref_slice %arg7[%c1_i32_65, %c1_i32_66, %c0_i32_70] : memref<2x8x256xf32, #tpu.memory_space<vmem>> -> memref<1x1x256xf32, #tpu.memory_space<vmem>>
    %87 = tpu.memref_squeeze %86 : memref<1x1x256xf32, #tpu.memory_space<vmem>> -> memref<256xf32, #tpu.memory_space<vmem>>
    %88 = tpu.memref_slice %arg8[%c1_i32_67, %c1_i32_68] : memref<2x8x!tpu.dma_semaphore, #tpu.memory_space<semaphore_mem>> -> memref<1x1x!tpu.dma_semaphore, #tpu.memory_space<semaphore_mem>>
    %89 = tpu.memref_squeeze %88 : memref<1x1x!tpu.dma_semaphore, #tpu.memory_space<semaphore_mem>> -> memref<!tpu.dma_semaphore, #tpu.memory_space<semaphore_mem>>
    tpu.enqueue_dma source(%85 : memref<256xf32, #tpu.memory_space<any>>) target(%87 : memref<256xf32, #tpu.memory_space<vmem>>) target_semaphore(%89 : memref<!tpu.dma_semaphore, #tpu.memory_space<semaphore_mem>>)
    %c10 = arith.constant 10 : index
    %90 = memref.load %arg1[%c10] : memref<16xi32, #tpu.memory_space<smem>>
    %c0_i32_71 = arith.constant 0 : i32
    %c716_i32_72 = arith.constant 716 : i32
    %91 = arith.maxsi %c0_i32_71, %90 : i32
    %92 = arith.minsi %c716_i32_72, %91 : i32
    %c1_i32_73 = arith.constant 1 : i32
    %c2_i32_74 = arith.constant 2 : i32
    %c1_i32_75 = arith.constant 1 : i32
    %c2_i32_76 = arith.constant 2 : i32
    %c0_i32_77 = arith.constant 0 : i32
    %93 = tpu.memref_slice %arg2[%92, %c0_i32_77] : memref<717x256xf32, #tpu.memory_space<any>> -> memref<1x256xf32, #tpu.memory_space<any>>
    %94 = tpu.memref_squeeze %93 : memref<1x256xf32, #tpu.memory_space<any>> -> memref<256xf32, #tpu.memory_space<any>>
    %c0_i32_78 = arith.constant 0 : i32
    %95 = tpu.memref_slice %arg7[%c1_i32_73, %c2_i32_74, %c0_i32_78] : memref<2x8x256xf32, #tpu.memory_space<vmem>> -> memref<1x1x256xf32, #tpu.memory_space<vmem>>
    %96 = tpu.memref_squeeze %95 : memref<1x1x256xf32, #tpu.memory_space<vmem>> -> memref<256xf32, #tpu.memory_space<vmem>>
    %97 = tpu.memref_slice %arg8[%c1_i32_75, %c2_i32_76] : memref<2x8x!tpu.dma_semaphore, #tpu.memory_space<semaphore_mem>> -> memref<1x1x!tpu.dma_semaphore, #tpu.memory_space<semaphore_mem>>
    %98 = tpu.memref_squeeze %97 : memref<1x1x!tpu.dma_semaphore, #tpu.memory_space<semaphore_mem>> -> memref<!tpu.dma_semaphore, #tpu.memory_space<semaphore_mem>>
    tpu.enqueue_dma source(%94 : memref<256xf32, #tpu.memory_space<any>>) target(%96 : memref<256xf32, #tpu.memory_space<vmem>>) target_semaphore(%98 : memref<!tpu.dma_semaphore, #tpu.memory_space<semaphore_mem>>)
    %c11 = arith.constant 11 : index
    %99 = memref.load %arg1[%c11] : memref<16xi32, #tpu.memory_space<smem>>
    %c0_i32_79 = arith.constant 0 : i32
    %c716_i32_80 = arith.constant 716 : i32
    %100 = arith.maxsi %c0_i32_79, %99 : i32
    %101 = arith.minsi %c716_i32_80, %100 : i32
    %c1_i32_81 = arith.constant 1 : i32
    %c3_i32_82 = arith.constant 3 : i32
    %c1_i32_83 = arith.constant 1 : i32
    %c3_i32_84 = arith.constant 3 : i32
    %c0_i32_85 = arith.constant 0 : i32
    %102 = tpu.memref_slice %arg2[%101, %c0_i32_85] : memref<717x256xf32, #tpu.memory_space<any>> -> memref<1x256xf32, #tpu.memory_space<any>>
    %103 = tpu.memref_squeeze %102 : memref<1x256xf32, #tpu.memory_space<any>> -> memref<256xf32, #tpu.memory_space<any>>
    %c0_i32_86 = arith.constant 0 : i32
    %104 = tpu.memref_slice %arg7[%c1_i32_81, %c3_i32_82, %c0_i32_86] : memref<2x8x256xf32, #tpu.memory_space<vmem>> -> memref<1x1x256xf32, #tpu.memory_space<vmem>>
    %105 = tpu.memref_squeeze %104 : memref<1x1x256xf32, #tpu.memory_space<vmem>> -> memref<256xf32, #tpu.memory_space<vmem>>
    %106 = tpu.memref_slice %arg8[%c1_i32_83, %c3_i32_84] : memref<2x8x!tpu.dma_semaphore, #tpu.memory_space<semaphore_mem>> -> memref<1x1x!tpu.dma_semaphore, #tpu.memory_space<semaphore_mem>>
    %107 = tpu.memref_squeeze %106 : memref<1x1x!tpu.dma_semaphore, #tpu.memory_space<semaphore_mem>> -> memref<!tpu.dma_semaphore, #tpu.memory_space<semaphore_mem>>
    tpu.enqueue_dma source(%103 : memref<256xf32, #tpu.memory_space<any>>) target(%105 : memref<256xf32, #tpu.memory_space<vmem>>) target_semaphore(%107 : memref<!tpu.dma_semaphore, #tpu.memory_space<semaphore_mem>>)
    %c12 = arith.constant 12 : index
    %108 = memref.load %arg1[%c12] : memref<16xi32, #tpu.memory_space<smem>>
    %c0_i32_87 = arith.constant 0 : i32
    %c716_i32_88 = arith.constant 716 : i32
    %109 = arith.maxsi %c0_i32_87, %108 : i32
    %110 = arith.minsi %c716_i32_88, %109 : i32
    %c1_i32_89 = arith.constant 1 : i32
    %c4_i32_90 = arith.constant 4 : i32
    %c1_i32_91 = arith.constant 1 : i32
    %c4_i32_92 = arith.constant 4 : i32
    %c0_i32_93 = arith.constant 0 : i32
    %111 = tpu.memref_slice %arg2[%110, %c0_i32_93] : memref<717x256xf32, #tpu.memory_space<any>> -> memref<1x256xf32, #tpu.memory_space<any>>
    %112 = tpu.memref_squeeze %111 : memref<1x256xf32, #tpu.memory_space<any>> -> memref<256xf32, #tpu.memory_space<any>>
    %c0_i32_94 = arith.constant 0 : i32
    %113 = tpu.memref_slice %arg7[%c1_i32_89, %c4_i32_90, %c0_i32_94] : memref<2x8x256xf32, #tpu.memory_space<vmem>> -> memref<1x1x256xf32, #tpu.memory_space<vmem>>
    %114 = tpu.memref_squeeze %113 : memref<1x1x256xf32, #tpu.memory_space<vmem>> -> memref<256xf32, #tpu.memory_space<vmem>>
    %115 = tpu.memref_slice %arg8[%c1_i32_91, %c4_i32_92] : memref<2x8x!tpu.dma_semaphore, #tpu.memory_space<semaphore_mem>> -> memref<1x1x!tpu.dma_semaphore, #tpu.memory_space<semaphore_mem>>
    %116 = tpu.memref_squeeze %115 : memref<1x1x!tpu.dma_semaphore, #tpu.memory_space<semaphore_mem>> -> memref<!tpu.dma_semaphore, #tpu.memory_space<semaphore_mem>>
    tpu.enqueue_dma source(%112 : memref<256xf32, #tpu.memory_space<any>>) target(%114 : memref<256xf32, #tpu.memory_space<vmem>>) target_semaphore(%116 : memref<!tpu.dma_semaphore, #tpu.memory_space<semaphore_mem>>)
    %c13 = arith.constant 13 : index
    %117 = memref.load %arg1[%c13] : memref<16xi32, #tpu.memory_space<smem>>
    %c0_i32_95 = arith.constant 0 : i32
    %c716_i32_96 = arith.constant 716 : i32
    %118 = arith.maxsi %c0_i32_95, %117 : i32
    %119 = arith.minsi %c716_i32_96, %118 : i32
    %c1_i32_97 = arith.constant 1 : i32
    %c5_i32_98 = arith.constant 5 : i32
    %c1_i32_99 = arith.constant 1 : i32
    %c5_i32_100 = arith.constant 5 : i32
    %c0_i32_101 = arith.constant 0 : i32
    %120 = tpu.memref_slice %arg2[%119, %c0_i32_101] : memref<717x256xf32, #tpu.memory_space<any>> -> memref<1x256xf32, #tpu.memory_space<any>>
    %121 = tpu.memref_squeeze %120 : memref<1x256xf32, #tpu.memory_space<any>> -> memref<256xf32, #tpu.memory_space<any>>
    %c0_i32_102 = arith.constant 0 : i32
    %122 = tpu.memref_slice %arg7[%c1_i32_97, %c5_i32_98, %c0_i32_102] : memref<2x8x256xf32, #tpu.memory_space<vmem>> -> memref<1x1x256xf32, #tpu.memory_space<vmem>>
    %123 = tpu.memref_squeeze %122 : memref<1x1x256xf32, #tpu.memory_space<vmem>> -> memref<256xf32, #tpu.memory_space<vmem>>
    %124 = tpu.memref_slice %arg8[%c1_i32_99, %c5_i32_100] : memref<2x8x!tpu.dma_semaphore, #tpu.memory_space<semaphore_mem>> -> memref<1x1x!tpu.dma_semaphore, #tpu.memory_space<semaphore_mem>>
    %125 = tpu.memref_squeeze %124 : memref<1x1x!tpu.dma_semaphore, #tpu.memory_space<semaphore_mem>> -> memref<!tpu.dma_semaphore, #tpu.memory_space<semaphore_mem>>
    tpu.enqueue_dma source(%121 : memref<256xf32, #tpu.memory_space<any>>) target(%123 : memref<256xf32, #tpu.memory_space<vmem>>) target_semaphore(%125 : memref<!tpu.dma_semaphore, #tpu.memory_space<semaphore_mem>>)
    %c14 = arith.constant 14 : index
    %126 = memref.load %arg1[%c14] : memref<16xi32, #tpu.memory_space<smem>>
    %c0_i32_103 = arith.constant 0 : i32
    %c716_i32_104 = arith.constant 716 : i32
    %127 = arith.maxsi %c0_i32_103, %126 : i32
    %128 = arith.minsi %c716_i32_104, %127 : i32
    %c1_i32_105 = arith.constant 1 : i32
    %c6_i32_106 = arith.constant 6 : i32
    %c1_i32_107 = arith.constant 1 : i32
    %c6_i32_108 = arith.constant 6 : i32
    %c0_i32_109 = arith.constant 0 : i32
    %129 = tpu.memref_slice %arg2[%128, %c0_i32_109] : memref<717x256xf32, #tpu.memory_space<any>> -> memref<1x256xf32, #tpu.memory_space<any>>
    %130 = tpu.memref_squeeze %129 : memref<1x256xf32, #tpu.memory_space<any>> -> memref<256xf32, #tpu.memory_space<any>>
    %c0_i32_110 = arith.constant 0 : i32
    %131 = tpu.memref_slice %arg7[%c1_i32_105, %c6_i32_106, %c0_i32_110] : memref<2x8x256xf32, #tpu.memory_space<vmem>> -> memref<1x1x256xf32, #tpu.memory_space<vmem>>
    %132 = tpu.memref_squeeze %131 : memref<1x1x256xf32, #tpu.memory_space<vmem>> -> memref<256xf32, #tpu.memory_space<vmem>>
    %133 = tpu.memref_slice %arg8[%c1_i32_107, %c6_i32_108] : memref<2x8x!tpu.dma_semaphore, #tpu.memory_space<semaphore_mem>> -> memref<1x1x!tpu.dma_semaphore, #tpu.memory_space<semaphore_mem>>
    %134 = tpu.memref_squeeze %133 : memref<1x1x!tpu.dma_semaphore, #tpu.memory_space<semaphore_mem>> -> memref<!tpu.dma_semaphore, #tpu.memory_space<semaphore_mem>>
    tpu.enqueue_dma source(%130 : memref<256xf32, #tpu.memory_space<any>>) target(%132 : memref<256xf32, #tpu.memory_space<vmem>>) target_semaphore(%134 : memref<!tpu.dma_semaphore, #tpu.memory_space<semaphore_mem>>)
    %c15 = arith.constant 15 : index
    %135 = memref.load %arg1[%c15] : memref<16xi32, #tpu.memory_space<smem>>
    %c0_i32_111 = arith.constant 0 : i32
    %c716_i32_112 = arith.constant 716 : i32
    %136 = arith.maxsi %c0_i32_111, %135 : i32
    %137 = arith.minsi %c716_i32_112, %136 : i32
    %c1_i32_113 = arith.constant 1 : i32
    %c7_i32_114 = arith.constant 7 : i32
    %c1_i32_115 = arith.constant 1 : i32
    %c7_i32_116 = arith.constant 7 : i32
    %c0_i32_117 = arith.constant 0 : i32
    %138 = tpu.memref_slice %arg2[%137, %c0_i32_117] : memref<717x256xf32, #tpu.memory_space<any>> -> memref<1x256xf32, #tpu.memory_space<any>>
    %139 = tpu.memref_squeeze %138 : memref<1x256xf32, #tpu.memory_space<any>> -> memref<256xf32, #tpu.memory_space<any>>
    %c0_i32_118 = arith.constant 0 : i32
    %140 = tpu.memref_slice %arg7[%c1_i32_113, %c7_i32_114, %c0_i32_118] : memref<2x8x256xf32, #tpu.memory_space<vmem>> -> memref<1x1x256xf32, #tpu.memory_space<vmem>>
    %141 = tpu.memref_squeeze %140 : memref<1x1x256xf32, #tpu.memory_space<vmem>> -> memref<256xf32, #tpu.memory_space<vmem>>
    %142 = tpu.memref_slice %arg8[%c1_i32_115, %c7_i32_116] : memref<2x8x!tpu.dma_semaphore, #tpu.memory_space<semaphore_mem>> -> memref<1x1x!tpu.dma_semaphore, #tpu.memory_space<semaphore_mem>>
    %143 = tpu.memref_squeeze %142 : memref<1x1x!tpu.dma_semaphore, #tpu.memory_space<semaphore_mem>> -> memref<!tpu.dma_semaphore, #tpu.memory_space<semaphore_mem>>
    tpu.enqueue_dma source(%139 : memref<256xf32, #tpu.memory_space<any>>) target(%141 : memref<256xf32, #tpu.memory_space<vmem>>) target_semaphore(%143 : memref<!tpu.dma_semaphore, #tpu.memory_space<semaphore_mem>>)
    %c0_i32_119 = arith.constant 0 : i32
    %c0_i32_120 = arith.constant 0 : i32
    %c0_i32_121 = arith.constant 0 : i32
    %c0_i32_122 = arith.constant 0 : i32
    %c0_i32_123 = arith.constant 0 : i32
    %c0_i32_124 = arith.constant 0 : i32
    %144 = tpu.memref_slice %arg2[%c0_i32_119, %c0_i32_124] : memref<717x256xf32, #tpu.memory_space<any>> -> memref<1x256xf32, #tpu.memory_space<any>>
    %145 = tpu.memref_squeeze %144 : memref<1x256xf32, #tpu.memory_space<any>> -> memref<256xf32, #tpu.memory_space<any>>
    %c0_i32_125 = arith.constant 0 : i32
    %146 = tpu.memref_slice %arg7[%c0_i32_120, %c0_i32_121, %c0_i32_125] : memref<2x8x256xf32, #tpu.memory_space<vmem>> -> memref<1x1x256xf32, #tpu.memory_space<vmem>>
    %147 = tpu.memref_squeeze %146 : memref<1x1x256xf32, #tpu.memory_space<vmem>> -> memref<256xf32, #tpu.memory_space<vmem>>
    %148 = tpu.memref_slice %arg8[%c0_i32_122, %c0_i32_123] : memref<2x8x!tpu.dma_semaphore, #tpu.memory_space<semaphore_mem>> -> memref<1x1x!tpu.dma_semaphore, #tpu.memory_space<semaphore_mem>>
    %149 = tpu.memref_squeeze %148 : memref<1x1x!tpu.dma_semaphore, #tpu.memory_space<semaphore_mem>> -> memref<!tpu.dma_semaphore, #tpu.memory_space<semaphore_mem>>
    tpu.wait_dma2 semaphore(%149 : memref<!tpu.dma_semaphore, #tpu.memory_space<semaphore_mem>>) src(%145 : memref<256xf32, #tpu.memory_space<any>>) dst(%147 : memref<256xf32, #tpu.memory_space<vmem>>)
    %c0_i32_126 = arith.constant 0 : i32
    %c0_i32_127 = arith.constant 0 : i32
    %c1_i32_128 = arith.constant 1 : i32
    %c0_i32_129 = arith.constant 0 : i32
    %c1_i32_130 = arith.constant 1 : i32
    %c0_i32_131 = arith.constant 0 : i32
    %150 = tpu.memref_slice %arg2[%c0_i32_126, %c0_i32_131] : memref<717x256xf32, #tpu.memory_space<any>> -> memref<1x256xf32, #tpu.memory_space<any>>
    %151 = tpu.memref_squeeze %150 : memref<1x256xf32, #tpu.memory_space<any>> -> memref<256xf32, #tpu.memory_space<any>>
    %c0_i32_132 = arith.constant 0 : i32
    %152 = tpu.memref_slice %arg7[%c0_i32_127, %c1_i32_128, %c0_i32_132] : memref<2x8x256xf32, #tpu.memory_space<vmem>> -> memref<1x1x256xf32, #tpu.memory_space<vmem>>
    %153 = tpu.memref_squeeze %152 : memref<1x1x256xf32, #tpu.memory_space<vmem>> -> memref<256xf32, #tpu.memory_space<vmem>>
    %154 = tpu.memref_slice %arg8[%c0_i32_129, %c1_i32_130] : memref<2x8x!tpu.dma_semaphore, #tpu.memory_space<semaphore_mem>> -> memref<1x1x!tpu.dma_semaphore, #tpu.memory_space<semaphore_mem>>
    %155 = tpu.memref_squeeze %154 : memref<1x1x!tpu.dma_semaphore, #tpu.memory_space<semaphore_mem>> -> memref<!tpu.dma_semaphore, #tpu.memory_space<semaphore_mem>>
    tpu.wait_dma2 semaphore(%155 : memref<!tpu.dma_semaphore, #tpu.memory_space<semaphore_mem>>) src(%151 : memref<256xf32, #tpu.memory_space<any>>) dst(%153 : memref<256xf32, #tpu.memory_space<vmem>>)
    %c0_i32_133 = arith.constant 0 : i32
    %c0_i32_134 = arith.constant 0 : i32
    %c2_i32_135 = arith.constant 2 : i32
    %c0_i32_136 = arith.constant 0 : i32
    %c2_i32_137 = arith.constant 2 : i32
    %c0_i32_138 = arith.constant 0 : i32
    %156 = tpu.memref_slice %arg2[%c0_i32_133, %c0_i32_138] : memref<717x256xf32, #tpu.memory_space<any>> -> memref<1x256xf32, #tpu.memory_space<any>>
    %157 = tpu.memref_squeeze %156 : memref<1x256xf32, #tpu.memory_space<any>> -> memref<256xf32, #tpu.memory_space<any>>
    %c0_i32_139 = arith.constant 0 : i32
    %158 = tpu.memref_slice %arg7[%c0_i32_134, %c2_i32_135, %c0_i32_139] : memref<2x8x256xf32, #tpu.memory_space<vmem>> -> memref<1x1x256xf32, #tpu.memory_space<vmem>>
    %159 = tpu.memref_squeeze %158 : memref<1x1x256xf32, #tpu.memory_space<vmem>> -> memref<256xf32, #tpu.memory_space<vmem>>
    %160 = tpu.memref_slice %arg8[%c0_i32_136, %c2_i32_137] : memref<2x8x!tpu.dma_semaphore, #tpu.memory_space<semaphore_mem>> -> memref<1x1x!tpu.dma_semaphore, #tpu.memory_space<semaphore_mem>>
    %161 = tpu.memref_squeeze %160 : memref<1x1x!tpu.dma_semaphore, #tpu.memory_space<semaphore_mem>> -> memref<!tpu.dma_semaphore, #tpu.memory_space<semaphore_mem>>
    tpu.wait_dma2 semaphore(%161 : memref<!tpu.dma_semaphore, #tpu.memory_space<semaphore_mem>>) src(%157 : memref<256xf32, #tpu.memory_space<any>>) dst(%159 : memref<256xf32, #tpu.memory_space<vmem>>)
    %c0_i32_140 = arith.constant 0 : i32
    %c0_i32_141 = arith.constant 0 : i32
    %c3_i32_142 = arith.constant 3 : i32
    %c0_i32_143 = arith.constant 0 : i32
    %c3_i32_144 = arith.constant 3 : i32
    %c0_i32_145 = arith.constant 0 : i32
    %162 = tpu.memref_slice %arg2[%c0_i32_140, %c0_i32_145] : memref<717x256xf32, #tpu.memory_space<any>> -> memref<1x256xf32, #tpu.memory_space<any>>
    %163 = tpu.memref_squeeze %162 : memref<1x256xf32, #tpu.memory_space<any>> -> memref<256xf32, #tpu.memory_space<any>>
    %c0_i32_146 = arith.constant 0 : i32
    %164 = tpu.memref_slice %arg7[%c0_i32_141, %c3_i32_142, %c0_i32_146] : memref<2x8x256xf32, #tpu.memory_space<vmem>> -> memref<1x1x256xf32, #tpu.memory_space<vmem>>
    %165 = tpu.memref_squeeze %164 : memref<1x1x256xf32, #tpu.memory_space<vmem>> -> memref<256xf32, #tpu.memory_space<vmem>>
    %166 = tpu.memref_slice %arg8[%c0_i32_143, %c3_i32_144] : memref<2x8x!tpu.dma_semaphore, #tpu.memory_space<semaphore_mem>> -> memref<1x1x!tpu.dma_semaphore, #tpu.memory_space<semaphore_mem>>
    %167 = tpu.memref_squeeze %166 : memref<1x1x!tpu.dma_semaphore, #tpu.memory_space<semaphore_mem>> -> memref<!tpu.dma_semaphore, #tpu.memory_space<semaphore_mem>>
    tpu.wait_dma2 semaphore(%167 : memref<!tpu.dma_semaphore, #tpu.memory_space<semaphore_mem>>) src(%163 : memref<256xf32, #tpu.memory_space<any>>) dst(%165 : memref<256xf32, #tpu.memory_space<vmem>>)
    %c0_i32_147 = arith.constant 0 : i32
    %c0_i32_148 = arith.constant 0 : i32
    %c4_i32_149 = arith.constant 4 : i32
    %c0_i32_150 = arith.constant 0 : i32
    %c4_i32_151 = arith.constant 4 : i32
    %c0_i32_152 = arith.constant 0 : i32
    %168 = tpu.memref_slice %arg2[%c0_i32_147, %c0_i32_152] : memref<717x256xf32, #tpu.memory_space<any>> -> memref<1x256xf32, #tpu.memory_space<any>>
    %169 = tpu.memref_squeeze %168 : memref<1x256xf32, #tpu.memory_space<any>> -> memref<256xf32, #tpu.memory_space<any>>
    %c0_i32_153 = arith.constant 0 : i32
    %170 = tpu.memref_slice %arg7[%c0_i32_148, %c4_i32_149, %c0_i32_153] : memref<2x8x256xf32, #tpu.memory_space<vmem>> -> memref<1x1x256xf32, #tpu.memory_space<vmem>>
    %171 = tpu.memref_squeeze %170 : memref<1x1x256xf32, #tpu.memory_space<vmem>> -> memref<256xf32, #tpu.memory_space<vmem>>
    %172 = tpu.memref_slice %arg8[%c0_i32_150, %c4_i32_151] : memref<2x8x!tpu.dma_semaphore, #tpu.memory_space<semaphore_mem>> -> memref<1x1x!tpu.dma_semaphore, #tpu.memory_space<semaphore_mem>>
    %173 = tpu.memref_squeeze %172 : memref<1x1x!tpu.dma_semaphore, #tpu.memory_space<semaphore_mem>> -> memref<!tpu.dma_semaphore, #tpu.memory_space<semaphore_mem>>
    tpu.wait_dma2 semaphore(%173 : memref<!tpu.dma_semaphore, #tpu.memory_space<semaphore_mem>>) src(%169 : memref<256xf32, #tpu.memory_space<any>>) dst(%171 : memref<256xf32, #tpu.memory_space<vmem>>)
    %c0_i32_154 = arith.constant 0 : i32
    %c0_i32_155 = arith.constant 0 : i32
    %c5_i32_156 = arith.constant 5 : i32
    %c0_i32_157 = arith.constant 0 : i32
    %c5_i32_158 = arith.constant 5 : i32
    %c0_i32_159 = arith.constant 0 : i32
    %174 = tpu.memref_slice %arg2[%c0_i32_154, %c0_i32_159] : memref<717x256xf32, #tpu.memory_space<any>> -> memref<1x256xf32, #tpu.memory_space<any>>
    %175 = tpu.memref_squeeze %174 : memref<1x256xf32, #tpu.memory_space<any>> -> memref<256xf32, #tpu.memory_space<any>>
    %c0_i32_160 = arith.constant 0 : i32
    %176 = tpu.memref_slice %arg7[%c0_i32_155, %c5_i32_156, %c0_i32_160] : memref<2x8x256xf32, #tpu.memory_space<vmem>> -> memref<1x1x256xf32, #tpu.memory_space<vmem>>
    %177 = tpu.memref_squeeze %176 : memref<1x1x256xf32, #tpu.memory_space<vmem>> -> memref<256xf32, #tpu.memory_space<vmem>>
    %178 = tpu.memref_slice %arg8[%c0_i32_157, %c5_i32_158] : memref<2x8x!tpu.dma_semaphore, #tpu.memory_space<semaphore_mem>> -> memref<1x1x!tpu.dma_semaphore, #tpu.memory_space<semaphore_mem>>
    %179 = tpu.memref_squeeze %178 : memref<1x1x!tpu.dma_semaphore, #tpu.memory_space<semaphore_mem>> -> memref<!tpu.dma_semaphore, #tpu.memory_space<semaphore_mem>>
    tpu.wait_dma2 semaphore(%179 : memref<!tpu.dma_semaphore, #tpu.memory_space<semaphore_mem>>) src(%175 : memref<256xf32, #tpu.memory_space<any>>) dst(%177 : memref<256xf32, #tpu.memory_space<vmem>>)
    %c0_i32_161 = arith.constant 0 : i32
    %c0_i32_162 = arith.constant 0 : i32
    %c6_i32_163 = arith.constant 6 : i32
    %c0_i32_164 = arith.constant 0 : i32
    %c6_i32_165 = arith.constant 6 : i32
    %c0_i32_166 = arith.constant 0 : i32
    %180 = tpu.memref_slice %arg2[%c0_i32_161, %c0_i32_166] : memref<717x256xf32, #tpu.memory_space<any>> -> memref<1x256xf32, #tpu.memory_space<any>>
    %181 = tpu.memref_squeeze %180 : memref<1x256xf32, #tpu.memory_space<any>> -> memref<256xf32, #tpu.memory_space<any>>
    %c0_i32_167 = arith.constant 0 : i32
    %182 = tpu.memref_slice %arg7[%c0_i32_162, %c6_i32_163, %c0_i32_167] : memref<2x8x256xf32, #tpu.memory_space<vmem>> -> memref<1x1x256xf32, #tpu.memory_space<vmem>>
    %183 = tpu.memref_squeeze %182 : memref<1x1x256xf32, #tpu.memory_space<vmem>> -> memref<256xf32, #tpu.memory_space<vmem>>
    %184 = tpu.memref_slice %arg8[%c0_i32_164, %c6_i32_165] : memref<2x8x!tpu.dma_semaphore, #tpu.memory_space<semaphore_mem>> -> memref<1x1x!tpu.dma_semaphore, #tpu.memory_space<semaphore_mem>>
    %185 = tpu.memref_squeeze %184 : memref<1x1x!tpu.dma_semaphore, #tpu.memory_space<semaphore_mem>> -> memref<!tpu.dma_semaphore, #tpu.memory_space<semaphore_mem>>
    tpu.wait_dma2 semaphore(%185 : memref<!tpu.dma_semaphore, #tpu.memory_space<semaphore_mem>>) src(%181 : memref<256xf32, #tpu.memory_space<any>>) dst(%183 : memref<256xf32, #tpu.memory_space<vmem>>)
    %c0_i32_168 = arith.constant 0 : i32
    %c0_i32_169 = arith.constant 0 : i32
    %c7_i32_170 = arith.constant 7 : i32
    %c0_i32_171 = arith.constant 0 : i32
    %c7_i32_172 = arith.constant 7 : i32
    %c0_i32_173 = arith.constant 0 : i32
    %186 = tpu.memref_slice %arg2[%c0_i32_168, %c0_i32_173] : memref<717x256xf32, #tpu.memory_space<any>> -> memref<1x256xf32, #tpu.memory_space<any>>
    %187 = tpu.memref_squeeze %186 : memref<1x256xf32, #tpu.memory_space<any>> -> memref<256xf32, #tpu.memory_space<any>>
    %c0_i32_174 = arith.constant 0 : i32
    %188 = tpu.memref_slice %arg7[%c0_i32_169, %c7_i32_170, %c0_i32_174] : memref<2x8x256xf32, #tpu.memory_space<vmem>> -> memref<1x1x256xf32, #tpu.memory_space<vmem>>
    %189 = tpu.memref_squeeze %188 : memref<1x1x256xf32, #tpu.memory_space<vmem>> -> memref<256xf32, #tpu.memory_space<vmem>>
    %190 = tpu.memref_slice %arg8[%c0_i32_171, %c7_i32_172] : memref<2x8x!tpu.dma_semaphore, #tpu.memory_space<semaphore_mem>> -> memref<1x1x!tpu.dma_semaphore, #tpu.memory_space<semaphore_mem>>
    %191 = tpu.memref_squeeze %190 : memref<1x1x!tpu.dma_semaphore, #tpu.memory_space<semaphore_mem>> -> memref<!tpu.dma_semaphore, #tpu.memory_space<semaphore_mem>>
    tpu.wait_dma2 semaphore(%191 : memref<!tpu.dma_semaphore, #tpu.memory_space<semaphore_mem>>) src(%187 : memref<256xf32, #tpu.memory_space<any>>) dst(%189 : memref<256xf32, #tpu.memory_space<vmem>>)
    %c0_i32_175 = arith.constant 0 : i32
    %c1_i32_176 = arith.constant 1 : i32
    %c0_i32_177 = arith.constant 0 : i32
    %c1_i32_178 = arith.constant 1 : i32
    %c0_i32_179 = arith.constant 0 : i32
    %c0_i32_180 = arith.constant 0 : i32
    %192 = tpu.memref_slice %arg2[%c0_i32_175, %c0_i32_180] : memref<717x256xf32, #tpu.memory_space<any>> -> memref<1x256xf32, #tpu.memory_space<any>>
    %193 = tpu.memref_squeeze %192 : memref<1x256xf32, #tpu.memory_space<any>> -> memref<256xf32, #tpu.memory_space<any>>
    %c0_i32_181 = arith.constant 0 : i32
    %194 = tpu.memref_slice %arg7[%c1_i32_176, %c0_i32_177, %c0_i32_181] : memref<2x8x256xf32, #tpu.memory_space<vmem>> -> memref<1x1x256xf32, #tpu.memory_space<vmem>>
    %195 = tpu.memref_squeeze %194 : memref<1x1x256xf32, #tpu.memory_space<vmem>> -> memref<256xf32, #tpu.memory_space<vmem>>
    %196 = tpu.memref_slice %arg8[%c1_i32_178, %c0_i32_179] : memref<2x8x!tpu.dma_semaphore, #tpu.memory_space<semaphore_mem>> -> memref<1x1x!tpu.dma_semaphore, #tpu.memory_space<semaphore_mem>>
    %197 = tpu.memref_squeeze %196 : memref<1x1x!tpu.dma_semaphore, #tpu.memory_space<semaphore_mem>> -> memref<!tpu.dma_semaphore, #tpu.memory_space<semaphore_mem>>
    tpu.wait_dma2 semaphore(%197 : memref<!tpu.dma_semaphore, #tpu.memory_space<semaphore_mem>>) src(%193 : memref<256xf32, #tpu.memory_space<any>>) dst(%195 : memref<256xf32, #tpu.memory_space<vmem>>)
    %c0_i32_182 = arith.constant 0 : i32
    %c1_i32_183 = arith.constant 1 : i32
    %c1_i32_184 = arith.constant 1 : i32
    %c1_i32_185 = arith.constant 1 : i32
    %c1_i32_186 = arith.constant 1 : i32
    %c0_i32_187 = arith.constant 0 : i32
    %198 = tpu.memref_slice %arg2[%c0_i32_182, %c0_i32_187] : memref<717x256xf32, #tpu.memory_space<any>> -> memref<1x256xf32, #tpu.memory_space<any>>
    %199 = tpu.memref_squeeze %198 : memref<1x256xf32, #tpu.memory_space<any>> -> memref<256xf32, #tpu.memory_space<any>>
    %c0_i32_188 = arith.constant 0 : i32
    %200 = tpu.memref_slice %arg7[%c1_i32_183, %c1_i32_184, %c0_i32_188] : memref<2x8x256xf32, #tpu.memory_space<vmem>> -> memref<1x1x256xf32, #tpu.memory_space<vmem>>
    %201 = tpu.memref_squeeze %200 : memref<1x1x256xf32, #tpu.memory_space<vmem>> -> memref<256xf32, #tpu.memory_space<vmem>>
    %202 = tpu.memref_slice %arg8[%c1_i32_185, %c1_i32_186] : memref<2x8x!tpu.dma_semaphore, #tpu.memory_space<semaphore_mem>> -> memref<1x1x!tpu.dma_semaphore, #tpu.memory_space<semaphore_mem>>
    %203 = tpu.memref_squeeze %202 : memref<1x1x!tpu.dma_semaphore, #tpu.memory_space<semaphore_mem>> -> memref<!tpu.dma_semaphore, #tpu.memory_space<semaphore_mem>>
    tpu.wait_dma2 semaphore(%203 : memref<!tpu.dma_semaphore, #tpu.memory_space<semaphore_mem>>) src(%199 : memref<256xf32, #tpu.memory_space<any>>) dst(%201 : memref<256xf32, #tpu.memory_space<vmem>>)
    %c0_i32_189 = arith.constant 0 : i32
    %c1_i32_190 = arith.constant 1 : i32
    %c2_i32_191 = arith.constant 2 : i32
    %c1_i32_192 = arith.constant 1 : i32
    %c2_i32_193 = arith.constant 2 : i32
    %c0_i32_194 = arith.constant 0 : i32
    %204 = tpu.memref_slice %arg2[%c0_i32_189, %c0_i32_194] : memref<717x256xf32, #tpu.memory_space<any>> -> memref<1x256xf32, #tpu.memory_space<any>>
    %205 = tpu.memref_squeeze %204 : memref<1x256xf32, #tpu.memory_space<any>> -> memref<256xf32, #tpu.memory_space<any>>
    %c0_i32_195 = arith.constant 0 : i32
    %206 = tpu.memref_slice %arg7[%c1_i32_190, %c2_i32_191, %c0_i32_195] : memref<2x8x256xf32, #tpu.memory_space<vmem>> -> memref<1x1x256xf32, #tpu.memory_space<vmem>>
    %207 = tpu.memref_squeeze %206 : memref<1x1x256xf32, #tpu.memory_space<vmem>> -> memref<256xf32, #tpu.memory_space<vmem>>
    %208 = tpu.memref_slice %arg8[%c1_i32_192, %c2_i32_193] : memref<2x8x!tpu.dma_semaphore, #tpu.memory_space<semaphore_mem>> -> memref<1x1x!tpu.dma_semaphore, #tpu.memory_space<semaphore_mem>>
    %209 = tpu.memref_squeeze %208 : memref<1x1x!tpu.dma_semaphore, #tpu.memory_space<semaphore_mem>> -> memref<!tpu.dma_semaphore, #tpu.memory_space<semaphore_mem>>
    tpu.wait_dma2 semaphore(%209 : memref<!tpu.dma_semaphore, #tpu.memory_space<semaphore_mem>>) src(%205 : memref<256xf32, #tpu.memory_space<any>>) dst(%207 : memref<256xf32, #tpu.memory_space<vmem>>)
    %c0_i32_196 = arith.constant 0 : i32
    %c1_i32_197 = arith.constant 1 : i32
    %c3_i32_198 = arith.constant 3 : i32
    %c1_i32_199 = arith.constant 1 : i32
    %c3_i32_200 = arith.constant 3 : i32
    %c0_i32_201 = arith.constant 0 : i32
    %210 = tpu.memref_slice %arg2[%c0_i32_196, %c0_i32_201] : memref<717x256xf32, #tpu.memory_space<any>> -> memref<1x256xf32, #tpu.memory_space<any>>
    %211 = tpu.memref_squeeze %210 : memref<1x256xf32, #tpu.memory_space<any>> -> memref<256xf32, #tpu.memory_space<any>>
    %c0_i32_202 = arith.constant 0 : i32
    %212 = tpu.memref_slice %arg7[%c1_i32_197, %c3_i32_198, %c0_i32_202] : memref<2x8x256xf32, #tpu.memory_space<vmem>> -> memref<1x1x256xf32, #tpu.memory_space<vmem>>
    %213 = tpu.memref_squeeze %212 : memref<1x1x256xf32, #tpu.memory_space<vmem>> -> memref<256xf32, #tpu.memory_space<vmem>>
    %214 = tpu.memref_slice %arg8[%c1_i32_199, %c3_i32_200] : memref<2x8x!tpu.dma_semaphore, #tpu.memory_space<semaphore_mem>> -> memref<1x1x!tpu.dma_semaphore, #tpu.memory_space<semaphore_mem>>
    %215 = tpu.memref_squeeze %214 : memref<1x1x!tpu.dma_semaphore, #tpu.memory_space<semaphore_mem>> -> memref<!tpu.dma_semaphore, #tpu.memory_space<semaphore_mem>>
    tpu.wait_dma2 semaphore(%215 : memref<!tpu.dma_semaphore, #tpu.memory_space<semaphore_mem>>) src(%211 : memref<256xf32, #tpu.memory_space<any>>) dst(%213 : memref<256xf32, #tpu.memory_space<vmem>>)
    %c0_i32_203 = arith.constant 0 : i32
    %c1_i32_204 = arith.constant 1 : i32
    %c4_i32_205 = arith.constant 4 : i32
    %c1_i32_206 = arith.constant 1 : i32
    %c4_i32_207 = arith.constant 4 : i32
    %c0_i32_208 = arith.constant 0 : i32
    %216 = tpu.memref_slice %arg2[%c0_i32_203, %c0_i32_208] : memref<717x256xf32, #tpu.memory_space<any>> -> memref<1x256xf32, #tpu.memory_space<any>>
    %217 = tpu.memref_squeeze %216 : memref<1x256xf32, #tpu.memory_space<any>> -> memref<256xf32, #tpu.memory_space<any>>
    %c0_i32_209 = arith.constant 0 : i32
    %218 = tpu.memref_slice %arg7[%c1_i32_204, %c4_i32_205, %c0_i32_209] : memref<2x8x256xf32, #tpu.memory_space<vmem>> -> memref<1x1x256xf32, #tpu.memory_space<vmem>>
    %219 = tpu.memref_squeeze %218 : memref<1x1x256xf32, #tpu.memory_space<vmem>> -> memref<256xf32, #tpu.memory_space<vmem>>
    %220 = tpu.memref_slice %arg8[%c1_i32_206, %c4_i32_207] : memref<2x8x!tpu.dma_semaphore, #tpu.memory_space<semaphore_mem>> -> memref<1x1x!tpu.dma_semaphore, #tpu.memory_space<semaphore_mem>>
    %221 = tpu.memref_squeeze %220 : memref<1x1x!tpu.dma_semaphore, #tpu.memory_space<semaphore_mem>> -> memref<!tpu.dma_semaphore, #tpu.memory_space<semaphore_mem>>
    tpu.wait_dma2 semaphore(%221 : memref<!tpu.dma_semaphore, #tpu.memory_space<semaphore_mem>>) src(%217 : memref<256xf32, #tpu.memory_space<any>>) dst(%219 : memref<256xf32, #tpu.memory_space<vmem>>)
    %c0_i32_210 = arith.constant 0 : i32
    %c1_i32_211 = arith.constant 1 : i32
    %c5_i32_212 = arith.constant 5 : i32
    %c1_i32_213 = arith.constant 1 : i32
    %c5_i32_214 = arith.constant 5 : i32
    %c0_i32_215 = arith.constant 0 : i32
    %222 = tpu.memref_slice %arg2[%c0_i32_210, %c0_i32_215] : memref<717x256xf32, #tpu.memory_space<any>> -> memref<1x256xf32, #tpu.memory_space<any>>
    %223 = tpu.memref_squeeze %222 : memref<1x256xf32, #tpu.memory_space<any>> -> memref<256xf32, #tpu.memory_space<any>>
    %c0_i32_216 = arith.constant 0 : i32
    %224 = tpu.memref_slice %arg7[%c1_i32_211, %c5_i32_212, %c0_i32_216] : memref<2x8x256xf32, #tpu.memory_space<vmem>> -> memref<1x1x256xf32, #tpu.memory_space<vmem>>
    %225 = tpu.memref_squeeze %224 : memref<1x1x256xf32, #tpu.memory_space<vmem>> -> memref<256xf32, #tpu.memory_space<vmem>>
    %226 = tpu.memref_slice %arg8[%c1_i32_213, %c5_i32_214] : memref<2x8x!tpu.dma_semaphore, #tpu.memory_space<semaphore_mem>> -> memref<1x1x!tpu.dma_semaphore, #tpu.memory_space<semaphore_mem>>
    %227 = tpu.memref_squeeze %226 : memref<1x1x!tpu.dma_semaphore, #tpu.memory_space<semaphore_mem>> -> memref<!tpu.dma_semaphore, #tpu.memory_space<semaphore_mem>>
    tpu.wait_dma2 semaphore(%227 : memref<!tpu.dma_semaphore, #tpu.memory_space<semaphore_mem>>) src(%223 : memref<256xf32, #tpu.memory_space<any>>) dst(%225 : memref<256xf32, #tpu.memory_space<vmem>>)
    %c0_i32_217 = arith.constant 0 : i32
    %c1_i32_218 = arith.constant 1 : i32
    %c6_i32_219 = arith.constant 6 : i32
    %c1_i32_220 = arith.constant 1 : i32
    %c6_i32_221 = arith.constant 6 : i32
    %c0_i32_222 = arith.constant 0 : i32
    %228 = tpu.memref_slice %arg2[%c0_i32_217, %c0_i32_222] : memref<717x256xf32, #tpu.memory_space<any>> -> memref<1x256xf32, #tpu.memory_space<any>>
    %229 = tpu.memref_squeeze %228 : memref<1x256xf32, #tpu.memory_space<any>> -> memref<256xf32, #tpu.memory_space<any>>
    %c0_i32_223 = arith.constant 0 : i32
    %230 = tpu.memref_slice %arg7[%c1_i32_218, %c6_i32_219, %c0_i32_223] : memref<2x8x256xf32, #tpu.memory_space<vmem>> -> memref<1x1x256xf32, #tpu.memory_space<vmem>>
    %231 = tpu.memref_squeeze %230 : memref<1x1x256xf32, #tpu.memory_space<vmem>> -> memref<256xf32, #tpu.memory_space<vmem>>
    %232 = tpu.memref_slice %arg8[%c1_i32_220, %c6_i32_221] : memref<2x8x!tpu.dma_semaphore, #tpu.memory_space<semaphore_mem>> -> memref<1x1x!tpu.dma_semaphore, #tpu.memory_space<semaphore_mem>>
    %233 = tpu.memref_squeeze %232 : memref<1x1x!tpu.dma_semaphore, #tpu.memory_space<semaphore_mem>> -> memref<!tpu.dma_semaphore, #tpu.memory_space<semaphore_mem>>
    tpu.wait_dma2 semaphore(%233 : memref<!tpu.dma_semaphore, #tpu.memory_space<semaphore_mem>>) src(%229 : memref<256xf32, #tpu.memory_space<any>>) dst(%231 : memref<256xf32, #tpu.memory_space<vmem>>)
    %c0_i32_224 = arith.constant 0 : i32
    %c1_i32_225 = arith.constant 1 : i32
    %c7_i32_226 = arith.constant 7 : i32
    %c1_i32_227 = arith.constant 1 : i32
    %c7_i32_228 = arith.constant 7 : i32
    %c0_i32_229 = arith.constant 0 : i32
    %234 = tpu.memref_slice %arg2[%c0_i32_224, %c0_i32_229] : memref<717x256xf32, #tpu.memory_space<any>> -> memref<1x256xf32, #tpu.memory_space<any>>
    %235 = tpu.memref_squeeze %234 : memref<1x256xf32, #tpu.memory_space<any>> -> memref<256xf32, #tpu.memory_space<any>>
    %c0_i32_230 = arith.constant 0 : i32
    %236 = tpu.memref_slice %arg7[%c1_i32_225, %c7_i32_226, %c0_i32_230] : memref<2x8x256xf32, #tpu.memory_space<vmem>> -> memref<1x1x256xf32, #tpu.memory_space<vmem>>
    %237 = tpu.memref_squeeze %236 : memref<1x1x256xf32, #tpu.memory_space<vmem>> -> memref<256xf32, #tpu.memory_space<vmem>>
    %238 = tpu.memref_slice %arg8[%c1_i32_227, %c7_i32_228] : memref<2x8x!tpu.dma_semaphore, #tpu.memory_space<semaphore_mem>> -> memref<1x1x!tpu.dma_semaphore, #tpu.memory_space<semaphore_mem>>
    %239 = tpu.memref_squeeze %238 : memref<1x1x!tpu.dma_semaphore, #tpu.memory_space<semaphore_mem>> -> memref<!tpu.dma_semaphore, #tpu.memory_space<semaphore_mem>>
    tpu.wait_dma2 semaphore(%239 : memref<!tpu.dma_semaphore, #tpu.memory_space<semaphore_mem>>) src(%235 : memref<256xf32, #tpu.memory_space<any>>) dst(%237 : memref<256xf32, #tpu.memory_space<vmem>>)
    %c0_231 = arith.constant 0 : index
    %c0_232 = arith.constant 0 : index
    %c0_233 = arith.constant 0 : index
    %240 = vector.load %arg7[%c0_231, %c0_232, %c0_233] : memref<2x8x256xf32, #tpu.memory_space<vmem>>, vector<2x8x256xf32>
    %c0_234 = arith.constant 0 : index
    %c0_235 = arith.constant 0 : index
    %241 = vector.load %arg3[%c0_234, %c0_235] : memref<8x256xf32, #tpu.memory_space<vmem>>, vector<8x256xf32>
    %242 = vector.shape_cast %241 : vector<8x256xf32> to vector<1x8x256xf32>
    %243 = vector.broadcast %242 : vector<1x8x256xf32> to vector<2x8x256xf32>
    %244 = arith.addf %240, %243 : vector<2x8x256xf32>
    %cst = arith.constant dense<0.000000e+00> : vector<2x8xf32>
    %245 = vector.multi_reduction <add>, %244, %cst [2] : vector<2x8x256xf32> to vector<2x8xf32>
    %246 = vector.shape_cast %245 : vector<2x8xf32> to vector<2x8x1xf32>
    %cst_236 = arith.constant 2.560000e+02 : f32
    %247 = vector.broadcast %cst_236 : f32 to vector<2x8x1xf32>
    %248 = arith.divf %246, %247 : vector<2x8x1xf32>
    %249 = vector.broadcast %248 : vector<2x8x1xf32> to vector<2x8x256xf32>
    %250 = arith.subf %244, %249 : vector<2x8x256xf32>
    %251 = arith.mulf %250, %250 : vector<2x8x256xf32>
    %cst_237 = arith.constant dense<0.000000e+00> : vector<2x8xf32>
    %252 = vector.multi_reduction <add>, %251, %cst_237 [2] : vector<2x8x256xf32> to vector<2x8xf32>
    %253 = vector.shape_cast %252 : vector<2x8xf32> to vector<2x8x1xf32>
    %cst_238 = arith.constant 2.560000e+02 : f32
    %254 = vector.broadcast %cst_238 : f32 to vector<2x8x1xf32>
    %255 = arith.divf %253, %254 : vector<2x8x1xf32>
    %cst_239 = arith.constant 9.99999996E-13 : f32
    %256 = vector.broadcast %cst_239 : f32 to vector<2x8x1xf32>
    %257 = arith.addf %255, %256 : vector<2x8x1xf32>
    %258 = math.rsqrt %257 : vector<2x8x1xf32>
    %259 = vector.broadcast %258 : vector<2x8x1xf32> to vector<2x8x256xf32>
    %260 = arith.mulf %250, %259 : vector<2x8x256xf32>
    %c0_240 = arith.constant 0 : index
    %c0_241 = arith.constant 0 : index
    %261 = vector.load %arg4[%c0_240, %c0_241] : memref<1x256xf32, #tpu.memory_space<vmem>>, vector<1x256xf32>
    %262 = vector.shape_cast %261 : vector<1x256xf32> to vector<1x1x256xf32>
    %263 = vector.broadcast %262 : vector<1x1x256xf32> to vector<2x8x256xf32>
    %264 = arith.mulf %260, %263 : vector<2x8x256xf32>
    %c0_242 = arith.constant 0 : index
    %c0_243 = arith.constant 0 : index
    %265 = vector.load %arg5[%c0_242, %c0_243] : memref<1x256xf32, #tpu.memory_space<vmem>>, vector<1x256xf32>
    %266 = vector.shape_cast %265 : vector<1x256xf32> to vector<1x1x256xf32>
    %267 = vector.broadcast %266 : vector<1x1x256xf32> to vector<2x8x256xf32>
    %268 = arith.addf %264, %267 : vector<2x8x256xf32>
    %c0_244 = arith.constant 0 : index
    %c0_245 = arith.constant 0 : index
    %c0_246 = arith.constant 0 : index
    %269 = vector.load %arg6[%c0_244, %c0_245, %c0_246] : memref<2x8x256xf32, #tpu.memory_space<vmem>>, vector<2x8x256xf32>
    tpu.vector_store %arg6[%c0_244, %c0_245, %c0_246], %268 {strides = array<i32>} : memref<2x8x256xf32, #tpu.memory_space<vmem>>, vector<2x8x256xf32>,
    return
  }
  func.func @transform_1(%arg0: i32, %arg1: memref<16xi32, #tpu.memory_space<smem>>) -> (i32, i32) {
    %c0_i32 = arith.constant 0 : i32
    %c0_i32_0 = arith.constant 0 : i32
    %c0_i32_1 = arith.constant 0 : i32
    return %c0_i32, %c0_i32_0 : i32, i32
  }
  func.func @transform_2(%arg0: i32, %arg1: memref<16xi32, #tpu.memory_space<smem>>) -> (i32, i32) {
    %c0_i32 = arith.constant 0 : i32
    %c0_i32_0 = arith.constant 0 : i32
    %c0_i32_1 = arith.constant 0 : i32
    return %c0_i32, %c0_i32_0 : i32, i32
  }
  func.func @transform_3(%arg0: i32, %arg1: memref<16xi32, #tpu.memory_space<smem>>) -> (i32, i32) {
    %c0_i32 = arith.constant 0 : i32
    %c0_i32_0 = arith.constant 0 : i32
    %c0_i32_1 = arith.constant 0 : i32
    return %c0_i32, %c0_i32_0 : i32, i32
  }
  func.func @transform_4(%arg0: i32, %arg1: memref<16xi32, #tpu.memory_space<smem>>) -> (i32, i32, i32) {
    %c0_i32 = arith.constant 0 : i32
    %c0_i32_0 = arith.constant 0 : i32
    %c0_i32_1 = arith.constant 0 : i32
    %c0_i32_2 = arith.constant 0 : i32
    return %c0_i32, %c0_i32_0, %c0_i32_1 : i32, i32, i32
  }
}

</mosaic_0001>

<llo_original>
// kernel: tpu_custom_call.1
$region0: #{tpu_custom_call.1}
  #allocation0 [shape = 'u32[]', space=smem, size = 0x4, offset = 0x4, fixed_abs, tag = 'smem constant byte address 0x4 - core index']
  #allocation1 [shape = 'u32[144,128]{1,0:T(1,128)}', space=vmem, size = 0x12000, scoped, tag = 'internal scratch']
  #allocation2 [shape = 'f32[2,8,256]{2,1,0:T(8,128)}', space=vmem, size = 0x4000, scoped, tag = 'scratch operand']
  #allocation3 [shape = 's32[16]{0}', space=sflag, size = 0x40, scoped, tag = 'scratch operand']
  #allocation4 [shape = 's32[1]{0}', space=sflag, size = 0x4, scoped, tag = 'scoped memory for tpu_custom_call.1']
  #allocation5 [shape = 'u8[512]{0}', space=smem, size = 0x200, scoped, tag = 'prefetched SMEM operand 0']
  #allocation10 [shape = 's32[]', space=sflag, size = 0x4, offset = 0, fixed_abs, tag = 'sflag constant byte address 0x0 - dummy sync flag']
  #allocation11 [shape = 's32[]', space=sflag, size = 0x4, offset = 0, fixed_abs, tag = 'sflag constant byte address 0x0 - dummy sync flag']
  #allocation12 [shape = 's32[]', space=sflag, size = 0x4, offset = 0, fixed_abs, tag = 'sflag constant byte address 0x0 - dummy sync flag']
  #allocation13 [shape = 's32[]', space=sflag, size = 0x4, offset = 0, fixed_abs, tag = 'sflag constant byte address 0x0 - dummy sync flag']
  #allocation14 [shape = 's32[]', space=sflag, size = 0x4, offset = 0, fixed_abs, tag = 'sflag constant byte address 0x0 - dummy sync flag']
  #allocation15 [shape = 's32[]', space=sflag, size = 0x4, offset = 0, fixed_abs, tag = 'sflag constant byte address 0x0 - dummy sync flag']
  #allocation16 [shape = 's32[]', space=sflag, size = 0x4, offset = 0, fixed_abs, tag = 'sflag constant byte address 0x0 - dummy sync flag']
  #allocation17 [shape = 's32[]', space=sflag, size = 0x4, offset = 0, fixed_abs, tag = 'sflag constant byte address 0x0 - dummy sync flag']
  #allocation18 [shape = 's32[]', space=sflag, size = 0x4, offset = 0, fixed_abs, tag = 'sflag constant byte address 0x0 - dummy sync flag']
  #allocation19 [shape = 's32[]', space=sflag, size = 0x4, offset = 0, fixed_abs, tag = 'sflag constant byte address 0x0 - dummy sync flag']
  #allocation20 [shape = 's32[]', space=sflag, size = 0x4, offset = 0, fixed_abs, tag = 'sflag constant byte address 0x0 - dummy sync flag']
  #allocation21 [shape = 's32[]', space=sflag, size = 0x4, offset = 0, fixed_abs, tag = 'sflag constant byte address 0x0 - dummy sync flag']
  #allocation22 [shape = 's32[]', space=sflag, size = 0x4, offset = 0, fixed_abs, tag = 'sflag constant byte address 0x0 - dummy sync flag']
  #allocation23 [shape = 's32[]', space=sflag, size = 0x4, offset = 0, fixed_abs, tag = 'sflag constant byte address 0x0 - dummy sync flag']
  #allocation24 [shape = 's32[]', space=sflag, size = 0x4, offset = 0, fixed_abs, tag = 'sflag constant byte address 0x0 - dummy sync flag']
  #allocation25 [shape = 's32[]', space=sflag, size = 0x4, offset = 0, fixed_abs, tag = 'sflag constant byte address 0x0 - dummy sync flag']
  %s0 = inlined_call_operand.hbm [shape: s32[16], index: 0, kind: input, shape index: {}]
  %s1 = inlined_call_operand.hbm [shape: f32[717,256], index: 1, kind: input, shape index: {}]
  %s2 = inlined_call_operand.hbm [shape: f32[8,256], index: 2, kind: input, shape index: {}]
  %s3 = inlined_call_operand.vmem [shape: f32[1,256], index: 3, kind: input, shape index: {}]
  %s4 = inlined_call_operand.vmem [shape: f32[1,256], index: 4, kind: input, shape index: {}]
  %s5 = inlined_call_operand.hbm [shape: f32[2,8,256], index: 5, kind: output, shape index: {}]
  %s6 = sld [smem:[#allocation0]]
  $region26: #{tpu_custom_call.1} parent=0
    _
  %s8 = ssub.s32 1, %s6
  %s9 = scalar_select 0, %s8, %s6
  %11 = dma.hbm_to_smem %s0, 16, [#allocation5], [#allocation4]
  %12 = dma.done [#allocation4], 16
  %13 = sfence
  $region1: #{tpu_custom_call.1} parent=0
    #allocation6 [shape = 'u8[8192]{0}', space=vmem, size = 0x2000, scoped, tag = 'input window, operand 2, single buffered']
    #allocation7 [shape = 's32[1]{0}', space=sflag, size = 0x4, scoped, tag = 'scoped memory for tpu_custom_call.1']
    #allocation8 [shape = 's32[1]{0}', space=sflag, size = 0x4, scoped, tag = 'scoped memory for tpu_custom_call.1']
    #allocation9 [shape = 'u8[16384]{0}', space=vmem, size = 0x4000, scoped, tag = 'output window, operand 0, single buffered']
    %14 = vsyncpa [#allocation7], 0
    %15 = vsyncpa [#allocation8], 0
    // Predicated region
    $region2: #{tpu_custom_call.1} parent=1 // pred_check
      _
    $region3: #{tpu_custom_call.1} parent=1 // pred_check_branch
      %17 = sbr.rel (0) target = $region5
    $region4: #{tpu_custom_call.1} parent=1 // pred_region
      %s19 = ssub.s32 256, 256
      %20 = vsyncadd [#allocation7], %s19
      %s22 = sshll.u32 [#allocation6], 4
      %s23 = int_to_ptr.vmem [resolvable:$true] %s22
      %25 = dma.hbm_to_vmem [thread:$0]  %s2, 256, %s23, [#allocation7]
    $region5: #{tpu_custom_call.1} parent=1 // pred_fallthru
      _
    // Predicated region
    $region6: #{tpu_custom_call.1} parent=1 // pred_check
      _
    $region7: #{tpu_custom_call.1} parent=1 // pred_check_branch
      %27 = sbr.rel (0) target = $region9
    $region8: #{tpu_custom_call.1} parent=1 // pred_region
      _
    $region9: #{tpu_custom_call.1} parent=1 // pred_fallthru
      _
    // Predicated region
    $region10: #{tpu_custom_call.1} parent=1 // pred_check
      _
    $region11: #{tpu_custom_call.1} parent=1 // pred_check_branch
      %29 = sbr.rel (0) target = $region13
    $region12: #{tpu_custom_call.1} parent=1 // pred_region
      _
    $region13: #{tpu_custom_call.1} parent=1 // pred_fallthru
      _
    // Predicated region
    $region14: #{tpu_custom_call.1} parent=1 // pred_check
      _
    $region15: #{tpu_custom_call.1} parent=1 // pred_check_branch
      %31 = sbr.rel (0) target = $region17
    $region16: #{tpu_custom_call.1} parent=1 // pred_region
      %32 = dma.done [#allocation7], 256
    $region17: #{tpu_custom_call.1} parent=1 // pred_fallthru
      _
    %s33 = sld [smem:[#allocation5]]
    %p34 = scmp.gt.s32.totalorder %s33, 0
    %s35 = scalar_select %p34, %s33, 0
    %p36 = scmp.lt.s32.totalorder %s35, 716
    %s37 = scalar_select %p36, %s35, 716
    %s38 = sshrl.u32 %s37, 3
    %s39 = sand.u32 %s37, 7
    %s40 = smul.u32 %s38, 16
    %s41 = sadd.s32 %s39, %s40
    %s42 = smul.addr %s41, 16
    %s43 = scalar_lea.hbm %s1, %s42
    %s45 = sshll.u32 [#allocation2], 4
    %s46 = int_to_ptr.vmem [resolvable:$true] %s45
    %48 = dma.hbm_to_vmem [thread:$0]  %s43, 32, %s46, [#allocation3], 128, 128, 1
    %s49 = sld [smem:[#allocation5 + $0x1]]
    %p50 = scmp.gt.s32.totalorder %s49, 0
    %s51 = scalar_select %p50, %s49, 0
    %p52 = scmp.lt.s32.totalorder %s51, 716
    %s53 = scalar_select %p52, %s51, 716
    %s54 = sshrl.u32 %s53, 3
    %s55 = sand.u32 %s53, 7
    %s56 = smul.u32 %s54, 16
    %s57 = sadd.s32 %s55, %s56
    %s58 = smul.addr %s57, 16
    %s59 = scalar_lea.hbm %s1, %s58
    %s60 = scalar_lea.vmem [#allocation2], 1
    %s61 = scalar_lea.sflag [#allocation3], 1
    %s63 = sshll.u32 %s60, 4
    %s64 = int_to_ptr.vmem [resolvable:$true] %s63
    %66 = dma.hbm_to_vmem [thread:$0]  %s59, 32, %s64, %s61, 128, 128, 1
    %s67 = sld [smem:[#allocation5 + $0x2]]
    %p68 = scmp.gt.s32.totalorder %s67, 0
    %s69 = scalar_select %p68, %s67, 0
    %p70 = scmp.lt.s32.totalorder %s69, 716
    %s71 = scalar_select %p70, %s69, 716
    %s72 = sshrl.u32 %s71, 3
    %s73 = sand.u32 %s71, 7
    %s74 = smul.u32 %s72, 16
    %s75 = sadd.s32 %s73, %s74
    %s76 = smul.addr %s75, 16
    %s77 = scalar_lea.hbm %s1, %s76
    %s78 = scalar_lea.vmem [#allocation2], 2
    %s79 = scalar_lea.sflag [#allocation3], 2
    %s81 = sshll.u32 %s78, 4
    %s82 = int_to_ptr.vmem [resolvable:$true] %s81
    %84 = dma.hbm_to_vmem [thread:$0]  %s77, 32, %s82, %s79, 128, 128, 1
    %s85 = sld [smem:[#allocation5 + $0x3]]
    %p86 = scmp.gt.s32.totalorder %s85, 0
    %s87 = scalar_select %p86, %s85, 0
    %p88 = scmp.lt.s32.totalorder %s87, 716
    %s89 = scalar_select %p88, %s87, 716
    %s90 = sshrl.u32 %s89, 3
    %s91 = sand.u32 %s89, 7
    %s92 = smul.u32 %s90, 16
    %s93 = sadd.s32 %s91, %s92
    %s94 = smul.addr %s93, 16
    %s95 = scalar_lea.hbm %s1, %s94
    %s96 = scalar_lea.vmem [#allocation2], 3
    %s97 = scalar_lea.sflag [#allocation3], 3
    %s99 = sshll.u32 %s96, 4
    %s100 = int_to_ptr.vmem [resolvable:$true] %s99
    %102 = dma.hbm_to_vmem [thread:$0]  %s95, 32, %s100, %s97, 128, 128, 1
    %s103 = sld [smem:[#allocation5 + $0x4]]
    %p104 = scmp.gt.s32.totalorder %s103, 0
    %s105 = scalar_select %p104, %s103, 0
    %p106 = scmp.lt.s32.totalorder %s105, 716
    %s107 = scalar_select %p106, %s105, 716
    %s108 = sshrl.u32 %s107, 3
    %s109 = sand.u32 %s107, 7
    %s110 = smul.u32 %s108, 16
    %s111 = sadd.s32 %s109, %s110
    %s112 = smul.addr %s111, 16
    %s113 = scalar_lea.hbm %s1, %s112
    %s114 = scalar_lea.vmem [#allocation2], 4
    %s115 = scalar_lea.sflag [#allocation3], 4
    %s117 = sshll.u32 %s114, 4
    %s118 = int_to_ptr.vmem [resolvable:$true] %s117
    %120 = dma.hbm_to_vmem [thread:$0]  %s113, 32, %s118, %s115, 128, 128, 1
    %s121 = sld [smem:[#allocation5 + $0x5]]
    %p122 = scmp.gt.s32.totalorder %s121, 0
    %s123 = scalar_select %p122, %s121, 0
    %p124 = scmp.lt.s32.totalorder %s123, 716
    %s125 = scalar_select %p124, %s123, 716
    %s126 = sshrl.u32 %s125, 3
    %s127 = sand.u32 %s125, 7
    %s128 = smul.u32 %s126, 16
    %s129 = sadd.s32 %s127, %s128
    %s130 = smul.addr %s129, 16
    %s131 = scalar_lea.hbm %s1, %s130
    %s132 = scalar_lea.vmem [#allocation2], 5
    %s133 = scalar_lea.sflag [#allocation3], 5
    %s135 = sshll.u32 %s132, 4
    %s136 = int_to_ptr.vmem [resolvable:$true] %s135
    %138 = dma.hbm_to_vmem [thread:$0]  %s131, 32, %s136, %s133, 128, 128, 1
    %s139 = sld [smem:[#allocation5 + $0x6]]
    %p140 = scmp.gt.s32.totalorder %s139, 0
    %s141 = scalar_select %p140, %s139, 0
    %p142 = scmp.lt.s32.totalorder %s141, 716
    %s143 = scalar_select %p142, %s141, 716
    %s144 = sshrl.u32 %s143, 3
    %s145 = sand.u32 %s143, 7
    %s146 = smul.u32 %s144, 16
    %s147 = sadd.s32 %s145, %s146
    %s148 = smul.addr %s147, 16
    %s149 = scalar_lea.hbm %s1, %s148
    %s150 = scalar_lea.vmem [#allocation2], 6
    %s151 = scalar_lea.sflag [#allocation3], 6
    %s153 = sshll.u32 %s150, 4
    %s154 = int_to_ptr.vmem [resolvable:$true] %s153
    %156 = dma.hbm_to_vmem [thread:$0]  %s149, 32, %s154, %s151, 128, 128, 1
    %s157 = sld [smem:[#allocation5 + $0x7]]
    %p158 = scmp.gt.s32.totalorder %s157, 0
    %s159 = scalar_select %p158, %s157, 0
    %p160 = scmp.lt.s32.totalorder %s159, 716
    %s161 = scalar_select %p160, %s159, 716
    %s162 = sshrl.u32 %s161, 3
    %s163 = sand.u32 %s161, 7
    %s164 = smul.u32 %s162, 16
    %s165 = sadd.s32 %s163, %s164
    %s166 = smul.addr %s165, 16
    %s167 = scalar_lea.hbm %s1, %s166
    %s168 = scalar_lea.vmem [#allocation2], 7
    %s169 = scalar_lea.sflag [#allocation3], 7
    %s171 = sshll.u32 %s168, 4
    %s172 = int_to_ptr.vmem [resolvable:$true] %s171
    %174 = dma.hbm_to_vmem [thread:$0]  %s167, 32, %s172, %s169, 128, 128, 1
    %s175 = sld [smem:[#allocation5 + $0x8]]
    %p176 = scmp.gt.s32.totalorder %s175, 0
    %s177 = scalar_select %p176, %s175, 0
    %p178 = scmp.lt.s32.totalorder %s177, 716
    %s179 = scalar_select %p178, %s177, 716
    %s180 = sshrl.u32 %s179, 3
    %s181 = sand.u32 %s179, 7
    %s182 = smul.u32 %s180, 16
    %s183 = sadd.s32 %s181, %s182
    %s184 = smul.addr %s183, 16
    %s185 = scalar_lea.hbm %s1, %s184
    %s186 = scalar_lea.vmem [#allocation2], 16
    %s187 = scalar_lea.sflag [#allocation3], 8
    %s189 = sshll.u32 %s186, 4
    %s190 = int_to_ptr.vmem [resolvable:$true] %s189
    %192 = dma.hbm_to_vmem [thread:$0]  %s185, 32, %s190, %s187, 128, 128, 1
    %s193 = sld [smem:[#allocation5 + $0x9]]
    %p194 = scmp.gt.s32.totalorder %s193, 0
    %s195 = scalar_select %p194, %s193, 0
    %p196 = scmp.lt.s32.totalorder %s195, 716
    %s197 = scalar_select %p196, %s195, 716
    %s198 = sshrl.u32 %s197, 3
    %s199 = sand.u32 %s197, 7
    %s200 = smul.u32 %s198, 16
    %s201 = sadd.s32 %s199, %s200
    %s202 = smul.addr %s201, 16
    %s203 = scalar_lea.hbm %s1, %s202
    %s204 = scalar_lea.vmem [#allocation2], 17
    %s205 = scalar_lea.sflag [#allocation3], 9
    %s207 = sshll.u32 %s204, 4
    %s208 = int_to_ptr.vmem [resolvable:$true] %s207
    %210 = dma.hbm_to_vmem [thread:$0]  %s203, 32, %s208, %s205, 128, 128, 1
    %s211 = sld [smem:[#allocation5 + $0xa]]
    %p212 = scmp.gt.s32.totalorder %s211, 0
    %s213 = scalar_select %p212, %s211, 0
    %p214 = scmp.lt.s32.totalorder %s213, 716
    %s215 = scalar_select %p214, %s213, 716
    %s216 = sshrl.u32 %s215, 3
    %s217 = sand.u32 %s215, 7
    %s218 = smul.u32 %s216, 16
    %s219 = sadd.s32 %s217, %s218
    %s220 = smul.addr %s219, 16
    %s221 = scalar_lea.hbm %s1, %s220
    %s222 = scalar_lea.vmem [#allocation2], 18
    %s223 = scalar_lea.sflag [#allocation3], 10
    %s225 = sshll.u32 %s222, 4
    %s226 = int_to_ptr.vmem [resolvable:$true] %s225
    %228 = dma.hbm_to_vmem [thread:$0]  %s221, 32, %s226, %s223, 128, 128, 1
    %s229 = sld [smem:[#allocation5 + $0xb]]
    %p230 = scmp.gt.s32.totalorder %s229, 0
    %s231 = scalar_select %p230, %s229, 0
    %p232 = scmp.lt.s32.totalorder %s231, 716
    %s233 = scalar_select %p232, %s231, 716
    %s234 = sshrl.u32 %s233, 3
    %s235 = sand.u32 %s233, 7
    %s236 = smul.u32 %s234, 16
    %s237 = sadd.s32 %s235, %s236
    %s238 = smul.addr %s237, 16
    %s239 = scalar_lea.hbm %s1, %s238
    %s240 = scalar_lea.vmem [#allocation2], 19
    %s241 = scalar_lea.sflag [#allocation3], 11
    %s243 = sshll.u32 %s240, 4
    %s244 = int_to_ptr.vmem [resolvable:$true] %s243
    %246 = dma.hbm_to_vmem [thread:$0]  %s239, 32, %s244, %s241, 128, 128, 1
    %s247 = sld [smem:[#allocation5 + $0xc]]
    %p248 = scmp.gt.s32.totalorder %s247, 0
    %s249 = scalar_select %p248, %s247, 0
    %p250 = scmp.lt.s32.totalorder %s249, 716
    %s251 = scalar_select %p250, %s249, 716
    %s252 = sshrl.u32 %s251, 3
    %s253 = sand.u32 %s251, 7
    %s254 = smul.u32 %s252, 16
    %s255 = sadd.s32 %s253, %s254
    %s256 = smul.addr %s255, 16
    %s257 = scalar_lea.hbm %s1, %s256
    %s258 = scalar_lea.vmem [#allocation2], 20
    %s259 = scalar_lea.sflag [#allocation3], 12
    %s261 = sshll.u32 %s258, 4
    %s262 = int_to_ptr.vmem [resolvable:$true] %s261
    %264 = dma.hbm_to_vmem [thread:$0]  %s257, 32, %s262, %s259, 128, 128, 1
    %s265 = sld [smem:[#allocation5 + $0xd]]
    %p266 = scmp.gt.s32.totalorder %s265, 0
    %s267 = scalar_select %p266, %s265, 0
    %p268 = scmp.lt.s32.totalorder %s267, 716
    %s269 = scalar_select %p268, %s267, 716
    %s270 = sshrl.u32 %s269, 3
    %s271 = sand.u32 %s269, 7
    %s272 = smul.u32 %s270, 16
    %s273 = sadd.s32 %s271, %s272
    %s274 = smul.addr %s273, 16
    %s275 = scalar_lea.hbm %s1, %s274
    %s276 = scalar_lea.vmem [#allocation2], 21
    %s277 = scalar_lea.sflag [#allocation3], 13
    %s279 = sshll.u32 %s276, 4
    %s280 = int_to_ptr.vmem [resolvable:$true] %s279
    %282 = dma.hbm_to_vmem [thread:$0]  %s275, 32, %s280, %s277, 128, 128, 1
    %s283 = sld [smem:[#allocation5 + $0xe]]
    %p284 = scmp.gt.s32.totalorder %s283, 0
    %s285 = scalar_select %p284, %s283, 0
    %p286 = scmp.lt.s32.totalorder %s285, 716
    %s287 = scalar_select %p286, %s285, 716
    %s288 = sshrl.u32 %s287, 3
    %s289 = sand.u32 %s287, 7
    %s290 = smul.u32 %s288, 16
    %s291 = sadd.s32 %s289, %s290
    %s292 = smul.addr %s291, 16
    %s293 = scalar_lea.hbm %s1, %s292
    %s294 = scalar_lea.vmem [#allocation2], 22
    %s295 = scalar_lea.sflag [#allocation3], 14
    %s297 = sshll.u32 %s294, 4
    %s298 = int_to_ptr.vmem [resolvable:$true] %s297
    %300 = dma.hbm_to_vmem [thread:$0]  %s293, 32, %s298, %s295, 128, 128, 1
    %s301 = sld [smem:[#allocation5 + $0xf]]
    %p302 = scmp.gt.s32.totalorder %s301, 0
    %s303 = scalar_select %p302, %s301, 0
    %p304 = scmp.lt.s32.totalorder %s303, 716
    %s305 = scalar_select %p304, %s303, 716
    %s306 = sshrl.u32 %s305, 3
    %s307 = sand.u32 %s305, 7
    %s308 = smul.u32 %s306, 16
    %s309 = sadd.s32 %s307, %s308
    %s310 = smul.addr %s309, 16
    %s311 = scalar_lea.hbm %s1, %s310
    %s312 = scalar_lea.vmem [#allocation2], 23
    %s313 = scalar_lea.sflag [#allocation3], 15
    %s315 = sshll.u32 %s312, 4
    %s316 = int_to_ptr.vmem [resolvable:$true] %s315
    %318 = dma.hbm_to_vmem [thread:$0]  %s311, 32, %s316, %s313, 128, 128, 1
    %320 = dma.done [#allocation3], 32
    %322 = dma.done %s61, 32
    %324 = dma.done %s79, 32
    %326 = dma.done %s97, 32
    %328 = dma.done %s115, 32
    %330 = dma.done %s133, 32
    %332 = dma.done %s151, 32
    %334 = dma.done %s169, 32
    %336 = dma.done %s187, 32
    %338 = dma.done %s205, 32
    %340 = dma.done %s223, 32
    %342 = dma.done %s241, 32
    %344 = dma.done %s259, 32
    %346 = dma.done %s277, 32
    %348 = dma.done %s295, 32
    %350 = dma.done %s313, 32
    %v351 = vld [vmem:[#allocation2] sm:$0xff]
    %v352 = vld [vmem:[#allocation2 + $0x8] sm:$0xff]
    %v353 = vld [vmem:[#allocation2 + $0x10] sm:$0xff]
    %v354 = vld [vmem:[#allocation2 + $0x18] sm:$0xff]
    %v355 = vld [vmem:[#allocation6] sm:$0xff]
    %v356 = vld [vmem:[#allocation6 + $0x8] sm:$0xff]
    %v357 = vadd.f32 %v351, %v355
    %v358 = vadd.f32 %v352, %v356
    %v359 = vadd.f32 %v353, %v355
    %v360 = vadd.f32 %v354, %v356
    %v361 = vadd.f32 %v357, %v358
    %362 = vadd.xlane.f32.xlu0 %v361
    %v363 = vpop.xlane.xlu0 %362
    %v364 = vadd.f32 %v359, %v360
    %365 = vadd.xlane.f32.xlu0 %v364
    %v366 = vpop.xlane.xlu0 %365
    %v367 = vrcp.pop 256.0
    %v368 = vmul.f32 %v363, %v367
    %v369 = vmul.f32 %v366, %v367
    %v370 = vsub.f32 %v357, %v368
    %v371 = vsub.f32 %v358, %v368
    %v372 = vsub.f32 %v359, %v369
    %v373 = vsub.f32 %v360, %v369
    %v374 = vmul.f32 %v370, %v370
    %v375 = vmul.f32 %v371, %v371
    %v376 = vmul.f32 %v372, %v372
    %v377 = vmul.f32 %v373, %v373
    %v378 = vadd.f32 %v374, %v375
    %379 = vadd.xlane.f32.xlu0 %v378
    %v380 = vpop.xlane.xlu0 %379
    %v381 = vadd.f32 %v376, %v377
    %382 = vadd.xlane.f32.xlu0 %v381
    %v383 = vpop.xlane.xlu0 %382
    %v384 = vmul.f32 %v380, %v367
    %v385 = vmul.f32 %v383, %v367
    %v386 = vadd.f32 %v384, 1e-12
    %v387 = vadd.f32 %v385, 1e-12
    %v388 = vrsqrt.pop %v386
    %v389 = vrsqrt.pop %v387
    %v390 = vmul.f32 %v370, %v388
    %v391 = vmul.f32 %v371, %v388
    %v392 = vmul.f32 %v372, %v389
    %v393 = vmul.f32 %v373, %v389
    %v394 = vld [vmem:[%s3] sm:$0x3]
    %v396 = vlaneseq
    %v397 = vshrl.u32 %v396, 7
    %v398 = vsub.s32 0, %v397
    %v399 = vrot.slane %v394, %v398
    %v400 = vlaneseq
    %v401 = vshrl.u32 %v400, 7
    %v402 = vsub.s32 1, %v401
    %v403 = vrot.slane %v394, %v402
    %v406 = vmul.f32 %v390, %v399
    %v407 = vmul.f32 %v391, %v403
    %v408 = vmul.f32 %v392, %v399
    %v409 = vmul.f32 %v393, %v403
    %v410 = vld [vmem:[%s4] sm:$0x3]
    %v412 = vlaneseq
    %v413 = vshrl.u32 %v412, 7
    %v414 = vsub.s32 0, %v413
    %v415 = vrot.slane %v410, %v414
    %v416 = vlaneseq
    %v417 = vshrl.u32 %v416, 7
    %v418 = vsub.s32 1, %v417
    %v419 = vrot.slane %v410, %v418
    %v422 = vadd.f32 %v406, %v415
    %v423 = vadd.f32 %v407, %v419
    %v424 = vadd.f32 %v408, %v415
    %v425 = vadd.f32 %v409, %v419
    %426 = vst [vmem:[#allocation9] sm:$0xff] %v422
    %427 = vst [vmem:[#allocation9 + $0x8] sm:$0xff] %v423
    %428 = vst [vmem:[#allocation9 + $0x10] sm:$0xff] %v424
    %429 = vst [vmem:[#allocation9 + $0x18] sm:$0xff] %v425
    // Predicated region
    $region18: #{tpu_custom_call.1} parent=1 // pred_check
      _
    $region19: #{tpu_custom_call.1} parent=1 // pred_check_branch
      %431 = sbr.rel (0) target = $region21
    $region20: #{tpu_custom_call.1} parent=1 // pred_region
      %s433 = ssub.s32 512, 512
      %434 = vsyncadd [#allocation8], %s433
      %s435 = sshll.u32 [#allocation9], 4
      %s436 = int_to_ptr.vmem [resolvable:$true] %s435
      %441 = dma.vmem_to_hbm [thread:$0]  %s436, 512, %s5, [#allocation8], 256, 256, 16
    $region21: #{tpu_custom_call.1} parent=1 // pred_fallthru
      _
    // Predicated region
    $region22: #{tpu_custom_call.1} parent=1 // pred_check
      _
    $region23: #{tpu_custom_call.1} parent=1 // pred_check_branch
      %443 = sbr.rel (0) target = $region25
    $region24: #{tpu_custom_call.1} parent=1 // pred_region
      %444 = dma.done [#allocation8], 512
    $region25: #{tpu_custom_call.1} parent=1 // pred_fallthru
      _
    %445 = vsyncpa [#allocation7], 1
    %446 = vsyncpa [#allocation8], 1
  %447 = vsyncmov [#allocation3]
  %s448 = vpop.sfrf %447
  %p449 = scmp.eq.s32.totalorder %s448, 0
  %p450 = pneg %p449
  %452 = shalt.err (%p450)
  %s453 = scalar_lea.sflag [#allocation3], 1
  %454 = vsyncmov %s453
  %s455 = vpop.sfrf %454
  %p456 = scmp.eq.s32.totalorder %s455, 0
  %p457 = pneg %p456
  %459 = shalt.err (%p457)
  %s460 = scalar_lea.sflag [#allocation3], 2
  %461 = vsyncmov %s460
  %s462 = vpop.sfrf %461
  %p463 = scmp.eq.s32.totalorder %s462, 0
  %p464 = pneg %p463
  %466 = shalt.err (%p464)
  %s467 = scalar_lea.sflag [#allocation3], 3
  %468 = vsyncmov %s467
  %s469 = vpop.sfrf %468
  %p470 = scmp.eq.s32.totalorder %s469, 0
  %p471 = pneg %p470
  %473 = shalt.err (%p471)
  %s474 = scalar_lea.sflag [#allocation3], 4
  %475 = vsyncmov %s474
  %s476 = vpop.sfrf %475
  %p477 = scmp.eq.s32.totalorder %s476, 0
  %p478 = pneg %p477
  %480 = shalt.err (%p478)
  %s481 = scalar_lea.sflag [#allocation3], 5
  %482 = vsyncmov %s481
  %s483 = vpop.sfrf %482
  %p484 = scmp.eq.s32.totalorder %s483, 0
  %p485 = pneg %p484
  %487 = shalt.err (%p485)
  %s488 = scalar_lea.sflag [#allocation3], 6
  %489 = vsyncmov %s488
  %s490 = vpop.sfrf %489
  %p491 = scmp.eq.s32.totalorder %s490, 0
  %p492 = pneg %p491
  %494 = shalt.err (%p492)
  %s495 = scalar_lea.sflag [#allocation3], 7
  %496 = vsyncmov %s495
  %s497 = vpop.sfrf %496
  %p498 = scmp.eq.s32.totalorder %s497, 0
  %p499 = pneg %p498
  %501 = shalt.err (%p499)
  %s502 = scalar_lea.sflag [#allocation3], 8
  %503 = vsyncmov %s502
  %s504 = vpop.sfrf %503
  %p505 = scmp.eq.s32.totalorder %s504, 0
  %p506 = pneg %p505
  %508 = shalt.err (%p506)
  %s509 = scalar_lea.sflag [#allocation3], 9
  %510 = vsyncmov %s509
  %s511 = vpop.sfrf %510
  %p512 = scmp.eq.s32.totalorder %s511, 0
  %p513 = pneg %p512
  %515 = shalt.err (%p513)
  %s516 = scalar_lea.sflag [#allocation3], 10
  %517 = vsyncmov %s516
  %s518 = vpop.sfrf %517
  %p519 = scmp.eq.s32.totalorder %s518, 0
  %p520 = pneg %p519
  %522 = shalt.err (%p520)
  %s523 = scalar_lea.sflag [#allocation3], 11
  %524 = vsyncmov %s523
  %s525 = vpop.sfrf %524
  %p526 = scmp.eq.s32.totalorder %s525, 0
  %p527 = pneg %p526
  %529 = shalt.err (%p527)
  %s530 = scalar_lea.sflag [#allocation3], 12
  %531 = vsyncmov %s530
  %s532 = vpop.sfrf %531
  %p533 = scmp.eq.s32.totalorder %s532, 0
  %p534 = pneg %p533
  %536 = shalt.err (%p534)
  %s537 = scalar_lea.sflag [#allocation3], 13
  %538 = vsyncmov %s537
  %s539 = vpop.sfrf %538
  %p540 = scmp.eq.s32.totalorder %s539, 0
  %p541 = pneg %p540
  %543 = shalt.err (%p541)
  %s544 = scalar_lea.sflag [#allocation3], 14
  %545 = vsyncmov %s544
  %s546 = vpop.sfrf %545
  %p547 = scmp.eq.s32.totalorder %s546, 0
  %p548 = pneg %p547
  %550 = shalt.err (%p548)
  %s551 = scalar_lea.sflag [#allocation3], 15
  %552 = vsyncmov %s551
  %s553 = vpop.sfrf %552
  %p554 = scmp.eq.s32.totalorder %s553, 0
  %p555 = pneg %p554
  %557 = shalt.err (%p555)

</llo_original>
